<compile_context>
chip_gen: v7x
topology: tpu7x:2x2x1
jax: 0.10.0
libtpu: 0.0.40
codegen_flags: <defaults>
</compile_context>

<pallas_src>
import random

import jax
import jax.numpy as jnp
from jax.experimental import pallas as pl
from jax.experimental.pallas import tpu as pltpu

SOS_token = 0
EOS_token = 1
_LANE = 128


# ----------------------------------------------------------------------------
# Helpers: padding + fused-gate GRU parameter layout
# ----------------------------------------------------------------------------
def _round_up(x, m):
    return ((x + m - 1) // m) * m


def _pad2d(x, rows, cols):
    out = jnp.zeros((rows, cols), x.dtype)
    return out.at[: x.shape[0], : x.shape[1]].set(x)


def _fuse_gru_params(w_ih_t, w_hh_t, b_ih, b_hh, h, hp):
    """Build a single (2*hp, 4*hp) weight so one MXU matmul of [x|h] produces
    [r_pre | z_pre | i_n | h_n] with 128-lane-aligned gate blocks.
    Zero padding keeps pad lanes of the hidden state exactly zero."""
    W = jnp.zeros((2 * hp, 4 * hp), jnp.float32)
    # input (x) rows
    W = W.at[0:h, 0 * hp:0 * hp + h].set(w_ih_t[:, 0:h])          # r
    W = W.at[0:h, 1 * hp:1 * hp + h].set(w_ih_t[:, h:2 * h])      # z
    W = W.at[0:h, 2 * hp:2 * hp + h].set(w_ih_t[:, 2 * h:3 * h])  # i_n
    # hidden (h) rows
    W = W.at[hp:hp + h, 0 * hp:0 * hp + h].set(w_hh_t[:, 0:h])          # r
    W = W.at[hp:hp + h, 1 * hp:1 * hp + h].set(w_hh_t[:, h:2 * h])      # z
    W = W.at[hp:hp + h, 3 * hp:3 * hp + h].set(w_hh_t[:, 2 * h:3 * h])  # h_n
    b = jnp.zeros((1, 4 * hp), jnp.float32)
    b = b.at[:, 0:h].set(b_ih[:, 0:h] + b_hh[:, 0:h])
    b = b.at[:, hp:hp + h].set(b_ih[:, h:2 * h] + b_hh[:, h:2 * h])
    b = b.at[:, 2 * hp:2 * hp + h].set(b_ih[:, 2 * h:3 * h])
    b = b.at[:, 3 * hp:3 * hp + h].set(b_hh[:, 2 * h:3 * h])
    return W, b


def _gru_step(x, h, w_ref, b_ref, hp):
    """Fused-gate GRU cell (PyTorch nn.GRU semantics) on padded tensors."""
    xh = jnp.concatenate([x, h], axis=-1)                          # (B, 2*hp)
    g = jnp.dot(xh, w_ref[...], preferred_element_type=jnp.float32) + b_ref[...]
    r = jax.nn.sigmoid(g[:, 0:hp])
    z = jax.nn.sigmoid(g[:, hp:2 * hp])
    n = jnp.tanh(g[:, 2 * hp:3 * hp] + r * g[:, 3 * hp:4 * hp])
    return (1.0 - z) * n + z * h


# ----------------------------------------------------------------------------
# Fused encoder kernel: whole source loop in one pallas_call
# ----------------------------------------------------------------------------
def _make_encoder_kernel(hp, batch):
    def kernel(src_ref, emb_ref, w_ref, b_ref, h_ref):
        t = pl.program_id(0)

        @pl.when(t == 0)
        def _init():
            h_ref[...] = jnp.zeros_like(h_ref)

        vin_p = emb_ref.shape[0]
        lane = jax.lax.broadcasted_iota(jnp.int32, (1, vin_p), 1)
        rows = [(lane == src_ref[t, b]).astype(jnp.float32) for b in range(batch)]
        onehot = jnp.concatenate(rows, axis=0)                      # (B, Vin_p)
        x = jnp.dot(onehot, emb_ref[...], preferred_element_type=jnp.float32)

        h = h_ref[...]
        h_ref[...] = _gru_step(x, h, w_ref, b_ref, hp)              # carry in output block

    return kernel


# ----------------------------------------------------------------------------
# Fused decoder kernel: whole target loop in one pallas_call
# ----------------------------------------------------------------------------
def _make_decoder_kernel(hp, vp, v_real, batch):
    def kernel(tgt_ref, tf_ref,
               h0_ref, emb_ref, w_ref, b_ref, wout_ref, bout_ref,
               out_ref, h_scr, oh_scr, act_scr):
        t = pl.program_id(0)
        lane = jax.lax.broadcasted_iota(jnp.int32, (batch, vp), 1)
        lane_f = lane.astype(jnp.float32)

        @pl.when(t == 0)
        def _init():
            h_scr[...] = h0_ref[...]
            oh_scr[...] = (lane == SOS_token).astype(jnp.float32)   # one-hot SOS
            act_scr[...] = jnp.ones((1, 1), jnp.float32)

        act = act_scr[...]                                          # (1, 1)
        h = h_scr[...]                                              # (B, hp)

        # embedding lookup via one-hot MXU matmul, then ReLU (DecoderRNN)
        x = jnp.maximum(
            jnp.dot(oh_scr[...], emb_ref[...], preferred_element_type=jnp.float32),
            0.0)

        h_new = _gru_step(x, h, w_ref, b_ref, hp)

        # output projection + masked log_softmax (pad vocab lanes -> -inf-ish)
        logits = jnp.dot(h_new, wout_ref[...],
                         preferred_element_type=jnp.float32) + bout_ref[...]
        logits = jnp.where(lane < v_real, logits, -1e30)
        m = jnp.max(logits, axis=-1, keepdims=True)
        s = logits - m
        logp = s - jnp.log(jnp.sum(jnp.exp(s), axis=-1, keepdims=True))

        # outputs[t] = decoder_output while active; zeros after the EOS break
        out_ref[0] = logp * act

        # greedy next token as a one-hot (first index among ties == torch argmax)
        idx = jnp.where(logits == m, lane_f, float(vp))
        amin = jnp.min(idx, axis=-1, keepdims=True)                 # (B, 1)
        pred_oh = (lane_f == amin).astype(jnp.float32)              # (B, vp)

        # teacher-forced next token one-hot from SMEM-prefetched targets
        tgt_rows = [(lane[0:1, :] == tgt_ref[t, b]).astype(jnp.float32)
                    for b in range(batch)]
        tgt_oh = jnp.concatenate(tgt_rows, axis=0)

        tf = tf_ref[t].astype(jnp.float32)                          # scalar 0/1
        next_oh = tf * tgt_oh + (1.0 - tf) * pred_oh

        # emulate `if not teacher_force and input.item() == EOS: break`
        # (reference checks batch element 0 only)
        eos_row = (lane[0:1, :] == EOS_token).astype(jnp.float32)
        eos_hit = jnp.sum(pred_oh[0:1, :] * eos_row, axis=-1, keepdims=True)
        act_scr[...] = act * (1.0 - (1.0 - tf) * eos_hit)

        # carry state (frozen once inactive)
        h_scr[...] = act * h_new + (1.0 - act) * h
        oh_scr[...] = act * next_oh + (1.0 - act) * oh_scr[...]

    return kernel


# ----------------------------------------------------------------------------
# Parameter construction (deterministic, synthetic)
# ----------------------------------------------------------------------------
def init_params(key, input_vocab, output_vocab, hidden):
    ks = jax.random.split(key, 12)
    scale = 0.1

    def mk(k, shape):
        return scale * jax.random.normal(k, shape, dtype=jnp.float32)

    return {
        # encoder: Embedding(input_vocab, hidden) + GRU(hidden, hidden)
        "enc_emb": mk(ks[0], (input_vocab, hidden)),
        "enc_wih_t": mk(ks[1], (hidden, 3 * hidden)),
        "enc_whh_t": mk(ks[2], (hidden, 3 * hidden)),
        "enc_bih": mk(ks[3], (1, 3 * hidden)),
        "enc_bhh": mk(ks[4], (1, 3 * hidden)),
        # decoder: Embedding + ReLU + GRU + Linear + log_softmax
        "dec_emb": mk(ks[5], (output_vocab, hidden)),
        "dec_wih_t": mk(ks[6], (hidden, 3 * hidden)),
        "dec_whh_t": mk(ks[7], (hidden, 3 * hidden)),
        "dec_bih": mk(ks[8], (1, 3 * hidden)),
        "dec_bhh": mk(ks[9], (1, 3 * hidden)),
        "dec_out_w_t": mk(ks[10], (hidden, output_vocab)),
        "dec_out_b": mk(ks[11], (1, output_vocab)),
    }


# ----------------------------------------------------------------------------
# Seq2Seq forward (mirrors the PyTorch module's forward)
# ----------------------------------------------------------------------------
class Seq2SeqPallas:
    def __init__(self, params, input_vocab, output_vocab, hidden):
        self.output_dim = output_vocab
        self.hidden = hidden
        hp = _round_up(hidden, _LANE)
        vin_p = _round_up(input_vocab, _LANE)
        vout_p = _round_up(output_vocab, _LANE)
        self.hp, self.vin_p, self.vout_p = hp, vin_p, vout_p

        # pad / fuse parameters once at construction (weights stay VMEM-resident
        # for the whole recurrence; total footprint ~1 MiB, fits v5e/v6e/v7x)
        self.enc_emb = _pad2d(params["enc_emb"], vin_p, hp)
        self.enc_w, self.enc_b = _fuse_gru_params(
            params["enc_wih_t"], params["enc_whh_t"],
            params["enc_bih"], params["enc_bhh"], hidden, hp)
        self.dec_emb = _pad2d(params["dec_emb"], vout_p, hp)
        self.dec_w, self.dec_b = _fuse_gru_params(
            params["dec_wih_t"], params["dec_whh_t"],
            params["dec_bih"], params["dec_bhh"], hidden, hp)
        self.out_w = _pad2d(params["dec_out_w_t"], hp, vout_p)
        self.out_b = _pad2d(params["dec_out_b"], 1, vout_p)

        self._jit_forward = jax.jit(self._forward_impl)

    # -- encoder: one grid-over-time pallas_call -----------------------------
    def _encode(self, source):
        L, B = source.shape
        hp = self.hp
        kernel = _make_encoder_kernel(hp, B)
        grid_spec = pltpu.PrefetchScalarGridSpec(
            num_scalar_prefetch=1,
            grid=(L,),
            in_specs=[
                pl.BlockSpec(self.enc_emb.shape, lambda t, src: (0, 0)),
                pl.BlockSpec(self.enc_w.shape, lambda t, src: (0, 0)),
                pl.BlockSpec(self.enc_b.shape, lambda t, src: (0, 0)),
            ],
            out_specs=pl.BlockSpec((B, hp), lambda t, src: (0, 0)),
        )
        return pl.pallas_call(
            kernel,
            out_shape=jax.ShapeDtypeStruct((B, hp), jnp.float32),
            grid_spec=grid_spec,
            compiler_params=pltpu.CompilerParams(
                dimension_semantics=("arbitrary",)),   # serial recurrence
        )(source, self.enc_emb, self.enc_w, self.enc_b)

    # -- decoder: one grid-over-time pallas_call ------------------------------
    def _decode(self, target, tf_mask, h0):
        T, B = target.shape
        hp, vp = self.hp, self.vout_p
        kernel = _make_decoder_kernel(hp, vp, self.output_dim, B)
        grid_spec = pltpu.PrefetchScalarGridSpec(
            num_scalar_prefetch=2,
            grid=(T,),
            in_specs=[
                pl.BlockSpec((B, hp), lambda t, tgt, tf: (0, 0)),
                pl.BlockSpec(self.dec_emb.shape, lambda t, tgt, tf: (0, 0)),
                pl.BlockSpec(self.dec_w.shape, lambda t, tgt, tf: (0, 0)),
                pl.BlockSpec(self.dec_b.shape, lambda t, tgt, tf: (0, 0)),
                pl.BlockSpec(self.out_w.shape, lambda t, tgt, tf: (0, 0)),
                pl.BlockSpec(self.out_b.shape, lambda t, tgt, tf: (0, 0)),
            ],
            out_specs=pl.BlockSpec((1, B, vp), lambda t, tgt, tf: (t, 0, 0)),
            scratch_shapes=[
                pltpu.VMEM((B, hp), jnp.float32),   # hidden carry
                pltpu.VMEM((B, vp), jnp.float32),   # current-input one-hot carry
                pltpu.VMEM((1, 1), jnp.float32),    # 'active' flag (EOS break)
            ],
        )
        out_padded = pl.pallas_call(
            kernel,
            out_shape=jax.ShapeDtypeStruct((T, B, vp), jnp.float32),
            grid_spec=grid_spec,
            compiler_params=pltpu.CompilerParams(
                dimension_semantics=("arbitrary",)),   # serial recurrence
        )(target, tf_mask, h0, self.dec_emb, self.dec_w, self.dec_b,
          self.out_w, self.out_b)
        return out_padded[:, :, :self.output_dim]

    def _forward_impl(self, source, target, tf_mask):
        h0 = self._encode(source)
        return self._decode(target, tf_mask, h0)

    def forward(self, source, target, teacher_forcing_ratio=0.5, tf_mask=None):
        # teacher-forcing decisions drawn on the host (deterministic under the
        # caller's random.seed), passed to the device as a mask -> no per-step
        # host sync in the decode loop.
        if tf_mask is None:
            tf_mask = [1 if random.random() < teacher_forcing_ratio else 0
                       for _ in range(target.shape[0])]
        tf_mask = jnp.asarray(tf_mask, dtype=jnp.int32)
        return self._jit_forward(source, target, tf_mask)

    # TODO(synk): for B > 1 on v7x, add a leading 'parallel' batch grid axis so
    # the two TensorCores split the batch; the time axis must stay serial.


# ----------------------------------------------------------------------------
# Pure-JAX reference (same semantics, Python loops) for correctness check
# ----------------------------------------------------------------------------
def _reference_forward(params, source, target, tf_mask):
    H = params["enc_whh_t"].shape[0]
    B = source.shape[1]
    V = params["dec_out_w_t"].shape[1]

    def gru(x, h, wih, whh, bih, bhh):
        gi = x @ wih + bih
        gh = h @ whh + bhh
        i_r, i_z, i_n = gi[:, :H], gi[:, H:2 * H], gi[:, 2 * H:]
        h_r, h_z, h_n = gh[:, :H], gh[:, H:2 * H], gh[:, 2 * H:]
        r = jax.nn.sigmoid(i_r + h_r)
        z = jax.nn.sigmoid(i_z + h_z)
        n = jnp.tanh(i_n + r * h_n)
        return (1.0 - z) * n + z * h

    h = jnp.zeros((B, H), jnp.float32)
    for i in range(source.shape[0]):
        x = params["enc_emb"][source[i]]
        h = gru(x, h, params["enc_wih_t"], params["enc_whh_t"],
                params["enc_bih"], params["enc_bhh"])

    outputs = jnp.zeros((target.shape[0], B, V), jnp.float32)
    dec_in = jnp.full((B,), SOS_token, dtype=jnp.int32)
    for t in range(target.shape[0]):
        x = jax.nn.relu(params["dec_emb"][dec_in])
        h = gru(x, h, params["dec_wih_t"], params["dec_whh_t"],
                params["dec_bih"], params["dec_bhh"])
        logits = h @ params["dec_out_w_t"] + params["dec_out_b"]
        outputs = outputs.at[t].set(jax.nn.log_softmax(logits, axis=-1))
        tf = bool(int(tf_mask[t]))
        topi = jnp.argmax(logits, axis=1).astype(jnp.int32)
        dec_in = target[t] if tf else topi
        if (not tf) and int(topi[0]) == EOS_token:
            break
    return outputs


# ----------------------------------------------------------------------------
# Driver
# ----------------------------------------------------------------------------
if __name__ == "__main__":
    random.seed(0)  # deterministic teacher forcing decisions

    INPUT_VOCAB = 64
    OUTPUT_VOCAB = 64
    HIDDEN = 32
    INPUT_LEN = 8
    TARGET_LEN = 8
    BATCH = 1  # reference decoder starts from a single [SOS_token] -> batch 1

    key = jax.random.PRNGKey(0)
    k_params, k_src, k_tgt = jax.random.split(key, 3)

    params = init_params(k_params, INPUT_VOCAB, OUTPUT_VOCAB, HIDDEN)
    model = Seq2SeqPallas(params, INPUT_VOCAB, OUTPUT_VOCAB, HIDDEN)

    source = jax.random.randint(k_src, (INPUT_LEN, BATCH), 2, INPUT_VOCAB,
                                dtype=jnp.int32)
    target = jax.random.randint(k_tgt, (TARGET_LEN, BATCH), 2, OUTPUT_VOCAB,
                                dtype=jnp.int32)

    # draw the teacher-forcing decisions once so the Pallas path and the
    # pure-JAX reference use identical decisions
    tf_mask = [1 if random.random() < 0.5 else 0 for _ in range(TARGET_LEN)]

    outputs = model.forward(source, target, teacher_forcing_ratio=0.5,
                            tf_mask=tf_mask)
    outputs = jax.block_until_ready(outputs)

    assert outputs.shape == (TARGET_LEN, BATCH, OUTPUT_VOCAB)
    assert bool(jnp.all(jnp.isfinite(outputs)))

    ref = _reference_forward(params, source, target,
                             jnp.asarray(tf_mask, dtype=jnp.int32))
    max_err = float(jnp.max(jnp.abs(outputs - ref)))
    assert max_err < 1e-4, f"mismatch vs reference: {max_err}"

    print("KERNEL_OK")
</pallas_src>

<mosaic_0001>
module attributes {stable_mosaic.version = 11 : i64} {
  func.func @kernel(%arg0: i32, %arg1: memref<8x1xi32, #tpu.memory_space<smem>>, %arg2: memref<8xi32, #tpu.memory_space<smem>>, %arg3: memref<1x128xf32, #tpu.memory_space<vmem>>, %arg4: memref<128x128xf32, #tpu.memory_space<vmem>>, %arg5: memref<256x512xf32, #tpu.memory_space<vmem>>, %arg6: memref<1x512xf32, #tpu.memory_space<vmem>>, %arg7: memref<128x128xf32, #tpu.memory_space<vmem>>, %arg8: memref<1x128xf32, #tpu.memory_space<vmem>>, %arg9: memref<1x1x128xf32, #tpu.memory_space<vmem>>, %arg10: memref<1x128xf32, #tpu.memory_space<vmem>>, %arg11: memref<1x128xf32, #tpu.memory_space<vmem>>, %arg12: memref<1x1xf32, #tpu.memory_space<vmem>>) attributes {dimension_semantics = [#tpu.dimension_semantics<arbitrary>], iteration_bounds = array<i64: 8>, scalar_prefetch = 2 : i64, scratch_operands = 3 : i64, tpu.core_type = #tpu.core_type<tc>, window_params = [{pipeline_mode = #tpu.pipeline_mode<synchronous>, transform_indices = @transform_0, window_bounds = array<i64: 1, 128>}, {pipeline_mode = #tpu.pipeline_mode<synchronous>, transform_indices = @transform_1, window_bounds = array<i64: 128, 128>}, {pipeline_mode = #tpu.pipeline_mode<synchronous>, transform_indices = @transform_2, window_bounds = array<i64: 256, 512>}, {pipeline_mode = #tpu.pipeline_mode<synchronous>, transform_indices = @transform_3, window_bounds = array<i64: 1, 512>}, {pipeline_mode = #tpu.pipeline_mode<synchronous>, transform_indices = @transform_4, window_bounds = array<i64: 128, 128>}, {pipeline_mode = #tpu.pipeline_mode<synchronous>, transform_indices = @transform_5, window_bounds = array<i64: 1, 128>}, {transform_indices = @transform_6, window_bounds = array<i64: 1, 1, 128>}]} {
    %0 = tpu.iota {dimensions = array<i32: 1>} : vector<1x128xi32>
    %1 = arith.sitofp %0 : vector<1x128xi32> to vector<1x128xf32>
    %c0_i32 = arith.constant 0 : i32
    %2 = arith.cmpi eq, %arg0, %c0_i32 : i32
    %3 = arith.extui %2 : i1 to i32
    %c0_i32_0 = arith.constant 0 : i32
    %4 = arith.cmpi ne, %3, %c0_i32_0 : i32
    scf.if %4 {
      %c0_45 = arith.constant 0 : index
      %c0_46 = arith.constant 0 : index
      %118 = vector.load %arg3[%c0_45, %c0_46] : memref<1x128xf32, #tpu.memory_space<vmem>>, vector<1x128xf32>
      %c0_47 = arith.constant 0 : index
      %c0_48 = arith.constant 0 : index
      %119 = vector.load %arg10[%c0_47, %c0_48] : memref<1x128xf32, #tpu.memory_space<vmem>>, vector<1x128xf32>
      tpu.vector_store %arg10[%c0_47, %c0_48], %118 {strides = array<i32>} : memref<1x128xf32, #tpu.memory_space<vmem>>, vector<1x128xf32>,
      %c0_i32_49 = arith.constant 0 : i32
      %120 = vector.broadcast %c0_i32_49 : i32 to vector<1x128xi32>
      %121 = arith.cmpi eq, %0, %120 : vector<1x128xi32>
      %122 = arith.extui %121 : vector<1x128xi1> to vector<1x128xi32>
      %123 = arith.sitofp %122 : vector<1x128xi32> to vector<1x128xf32>
      %c0_50 = arith.constant 0 : index
      %c0_51 = arith.constant 0 : index
      %124 = vector.load %arg11[%c0_50, %c0_51] : memref<1x128xf32, #tpu.memory_space<vmem>>, vector<1x128xf32>
      tpu.vector_store %arg11[%c0_50, %c0_51], %123 {strides = array<i32>} : memref<1x128xf32, #tpu.memory_space<vmem>>, vector<1x128xf32>,
      %cst_52 = arith.constant 1.000000e+00 : f32
      %125 = vector.broadcast %cst_52 : f32 to vector<1x1xf32>
      %c0_53 = arith.constant 0 : index
      %c0_54 = arith.constant 0 : index
      %126 = vector.load %arg12[%c0_53, %c0_54] : memref<1x1xf32, #tpu.memory_space<vmem>>, vector<1x1xf32>
      tpu.vector_store %arg12[%c0_53, %c0_54], %125 {strides = array<i32>} : memref<1x1xf32, #tpu.memory_space<vmem>>, vector<1x1xf32>,
    } else {
    }
    %c0 = arith.constant 0 : index
    %c0_1 = arith.constant 0 : index
    %5 = vector.load %arg12[%c0, %c0_1] : memref<1x1xf32, #tpu.memory_space<vmem>>, vector<1x1xf32>
    %c0_2 = arith.constant 0 : index
    %c0_3 = arith.constant 0 : index
    %6 = vector.load %arg10[%c0_2, %c0_3] : memref<1x128xf32, #tpu.memory_space<vmem>>, vector<1x128xf32>
    %c0_4 = arith.constant 0 : index
    %c0_5 = arith.constant 0 : index
    %7 = vector.load %arg11[%c0_4, %c0_5] : memref<1x128xf32, #tpu.memory_space<vmem>>, vector<1x128xf32>
    %c0_6 = arith.constant 0 : index
    %c0_7 = arith.constant 0 : index
    %8 = vector.load %arg4[%c0_6, %c0_7] : memref<128x128xf32, #tpu.memory_space<vmem>>, vector<128x128xf32>
    %cst = arith.constant dense<0.000000e+00> : vector<1x128xf32>
    %9 = tpu.matmul %7, %8, %cst {dimension_numbers = #tpu.dot_dimension_numbers<[1], [0], [0], [1], [0, 0, 1, 1], [], []>} : vector<1x128xf32>, vector<128x128xf32>, vector<1x128xf32> -> vector<1x128xf32>
    %cst_8 = arith.constant 0.000000e+00 : f32
    %10 = vector.broadcast %cst_8 : f32 to vector<1x128xf32>
    %11 = arith.maximumf %9, %10 : vector<1x128xf32>
    %12 = tpu.concatenate %11, %6 in 1 : vector<1x128xf32>, vector<1x128xf32> -> vector<1x256xf32>
    %c0_9 = arith.constant 0 : index
    %c0_10 = arith.constant 0 : index
    %13 = vector.load %arg5[%c0_9, %c0_10] : memref<256x512xf32, #tpu.memory_space<vmem>>, vector<256x512xf32>
    %cst_11 = arith.constant dense<0.000000e+00> : vector<1x512xf32>
    %14 = tpu.matmul %12, %13, %cst_11 {dimension_numbers = #tpu.dot_dimension_numbers<[1], [0], [0], [1], [0, 0, 1, 1], [], []>} : vector<1x256xf32>, vector<256x512xf32>, vector<1x512xf32> -> vector<1x512xf32>
    %c0_12 = arith.constant 0 : index
    %c0_13 = arith.constant 0 : index
    %15 = vector.load %arg6[%c0_12, %c0_13] : memref<1x512xf32, #tpu.memory_space<vmem>>, vector<1x512xf32>
    %16 = arith.addf %14, %15 : vector<1x512xf32>
    %17 = vector.extract_strided_slice %16 {offsets = [0, 0], sizes = [1, 128], strides = [1, 1]} : vector<1x512xf32> to vector<1x128xf32>
    %18 = arith.negf %17 : vector<1x128xf32>
    %19 = math.exp %18 : vector<1x128xf32>
    %cst_14 = arith.constant 1.000000e+00 : f32
    %20 = vector.broadcast %cst_14 : f32 to vector<1x128xf32>
    %21 = arith.addf %20, %19 : vector<1x128xf32>
    %22 = arith.divf %20, %21 : vector<1x128xf32>
    %23 = vector.extract_strided_slice %16 {offsets = [0, 128], sizes = [1, 128], strides = [1, 1]} : vector<1x512xf32> to vector<1x128xf32>
    %24 = arith.negf %23 : vector<1x128xf32>
    %25 = math.exp %24 : vector<1x128xf32>
    %cst_15 = arith.constant 1.000000e+00 : f32
    %26 = vector.broadcast %cst_15 : f32 to vector<1x128xf32>
    %27 = arith.addf %26, %25 : vector<1x128xf32>
    %28 = arith.divf %26, %27 : vector<1x128xf32>
    %29 = vector.extract_strided_slice %16 {offsets = [0, 256], sizes = [1, 128], strides = [1, 1]} : vector<1x512xf32> to vector<1x128xf32>
    %30 = vector.extract_strided_slice %16 {offsets = [0, 384], sizes = [1, 128], strides = [1, 1]} : vector<1x512xf32> to vector<1x128xf32>
    %31 = arith.mulf %22, %30 : vector<1x128xf32>
    %32 = arith.addf %29, %31 : vector<1x128xf32>
    %33 = math.tanh %32 : vector<1x128xf32>
    %cst_16 = arith.constant 1.000000e+00 : f32
    %34 = vector.broadcast %cst_16 : f32 to vector<1x128xf32>
    %35 = arith.subf %34, %28 : vector<1x128xf32>
    %36 = arith.mulf %35, %33 : vector<1x128xf32>
    %37 = arith.mulf %28, %6 : vector<1x128xf32>
    %38 = arith.addf %36, %37 : vector<1x128xf32>
    %c0_17 = arith.constant 0 : index
    %c0_18 = arith.constant 0 : index
    %39 = vector.load %arg7[%c0_17, %c0_18] : memref<128x128xf32, #tpu.memory_space<vmem>>, vector<128x128xf32>
    %cst_19 = arith.constant dense<0.000000e+00> : vector<1x128xf32>
    %40 = tpu.matmul %38, %39, %cst_19 {dimension_numbers = #tpu.dot_dimension_numbers<[1], [0], [0], [1], [0, 0, 1, 1], [], []>} : vector<1x128xf32>, vector<128x128xf32>, vector<1x128xf32> -> vector<1x128xf32>
    %c0_20 = arith.constant 0 : index
    %c0_21 = arith.constant 0 : index
    %41 = vector.load %arg8[%c0_20, %c0_21] : memref<1x128xf32, #tpu.memory_space<vmem>>, vector<1x128xf32>
    %42 = arith.addf %40, %41 : vector<1x128xf32>
    %c64_i32 = arith.constant 64 : i32
    %43 = vector.broadcast %c64_i32 : i32 to vector<1x128xi32>
    %44 = arith.cmpi slt, %0, %43 : vector<1x128xi32>
    %cst_22 = arith.constant -1.000000e+30 : f32
    %45 = vector.broadcast %cst_22 : f32 to vector<1x128xf32>
    %46 = arith.select %44, %42, %45 : vector<1x128xi1>, vector<1x128xf32>
    %cst_23 = arith.constant dense<0xFF800000> : vector<1xf32>
    %47 = vector.multi_reduction <maximumf>, %46, %cst_23 [1] : vector<1x128xf32> to vector<1xf32>
    %48 = vector.shape_cast %47 : vector<1xf32> to vector<1x1xf32>
    %49 = vector.broadcast %48 : vector<1x1xf32> to vector<1x128xf32>
    %50 = arith.subf %46, %49 : vector<1x128xf32>
    %51 = math.exp %50 : vector<1x128xf32>
    %cst_24 = arith.constant dense<0.000000e+00> : vector<1xf32>
    %52 = vector.multi_reduction <add>, %51, %cst_24 [1] : vector<1x128xf32> to vector<1xf32>
    %53 = vector.shape_cast %52 : vector<1xf32> to vector<1x1xf32>
    %54 = math.log %53 : vector<1x1xf32>
    %55 = vector.broadcast %54 : vector<1x1xf32> to vector<1x128xf32>
    %56 = arith.subf %50, %55 : vector<1x128xf32>
    %57 = vector.broadcast %5 : vector<1x1xf32> to vector<1x128xf32>
    %58 = arith.mulf %56, %57 : vector<1x128xf32>
    %c0_25 = arith.constant 0 : index
    %c0_26 = arith.constant 0 : index
    %c0_27 = arith.constant 0 : index
    %59 = vector.load %arg9[%c0_25, %c0_26, %c0_27] : memref<1x1x128xf32, #tpu.memory_space<vmem>>, vector<1x1x128xf32>
    %60 = vector.shape_cast %59 : vector<1x1x128xf32> to vector<1x128xf32>
    %61 = vector.shape_cast %58 : vector<1x128xf32> to vector<1x1x128xf32>
    tpu.vector_store %arg9[%c0_25, %c0_26, %c0_27], %61 {strides = array<i32>} : memref<1x1x128xf32, #tpu.memory_space<vmem>>, vector<1x1x128xf32>,
    %62 = vector.broadcast %48 : vector<1x1xf32> to vector<1x128xf32>
    %63 = arith.cmpf oeq, %46, %62 : vector<1x128xf32>
    %cst_28 = arith.constant 1.280000e+02 : f32
    %64 = vector.broadcast %cst_28 : f32 to vector<1x128xf32>
    %65 = arith.select %63, %1, %64 : vector<1x128xi1>, vector<1x128xf32>
    %cst_29 = arith.constant dense<0x7F800000> : vector<1xf32>
    %66 = vector.multi_reduction <minimumf>, %65, %cst_29 [1] : vector<1x128xf32> to vector<1xf32>
    %67 = vector.shape_cast %66 : vector<1xf32> to vector<1x1xf32>
    %68 = vector.broadcast %67 : vector<1x1xf32> to vector<1x128xf32>
    %69 = arith.cmpf oeq, %1, %68 : vector<1x128xf32>
    %70 = arith.extui %69 : vector<1x128xi1> to vector<1x128xi32>
    %71 = arith.sitofp %70 : vector<1x128xi32> to vector<1x128xf32>
    %72 = arith.index_cast %arg0 : i32 to index
    %c0_30 = arith.constant 0 : index
    %73 = memref.load %arg1[%72, %c0_30] : memref<8x1xi32, #tpu.memory_space<smem>>
    %74 = vector.broadcast %73 : i32 to vector<1x128xi32>
    %75 = arith.cmpi eq, %0, %74 : vector<1x128xi32>
    %76 = arith.extui %75 : vector<1x128xi1> to vector<1x128xi32>
    %77 = arith.sitofp %76 : vector<1x128xi32> to vector<1x128xf32>
    %78 = arith.index_cast %arg0 : i32 to index
    %79 = memref.load %arg2[%78] : memref<8xi32, #tpu.memory_space<smem>>
    %80 = arith.sitofp %79 : i32 to f32
    %81 = vector.broadcast %80 : f32 to vector<1x128xf32>
    %82 = arith.mulf %81, %77 : vector<1x128xf32>
    %cst_31 = arith.constant 1.000000e+00 : f32
    %83 = arith.subf %cst_31, %80 : f32
    %84 = vector.broadcast %83 : f32 to vector<1x128xf32>
    %85 = arith.mulf %84, %71 : vector<1x128xf32>
    %86 = arith.addf %82, %85 : vector<1x128xf32>
    %c1_i32 = arith.constant 1 : i32
    %87 = vector.broadcast %c1_i32 : i32 to vector<1x128xi32>
    %88 = arith.cmpi eq, %0, %87 : vector<1x128xi32>
    %89 = arith.extui %88 : vector<1x128xi1> to vector<1x128xi32>
    %90 = arith.sitofp %89 : vector<1x128xi32> to vector<1x128xf32>
    %91 = arith.mulf %71, %90 : vector<1x128xf32>
    %cst_32 = arith.constant dense<0.000000e+00> : vector<1xf32>
    %92 = vector.multi_reduction <add>, %91, %cst_32 [1] : vector<1x128xf32> to vector<1xf32>
    %93 = vector.shape_cast %92 : vector<1xf32> to vector<1x1xf32>
    %cst_33 = arith.constant 1.000000e+00 : f32
    %94 = arith.subf %cst_33, %80 : f32
    %95 = vector.broadcast %94 : f32 to vector<1x1xf32>
    %96 = arith.mulf %95, %93 : vector<1x1xf32>
    %cst_34 = arith.constant 1.000000e+00 : f32
    %97 = vector.broadcast %cst_34 : f32 to vector<1x1xf32>
    %98 = arith.subf %97, %96 : vector<1x1xf32>
    %99 = arith.mulf %5, %98 : vector<1x1xf32>
    %c0_35 = arith.constant 0 : index
    %c0_36 = arith.constant 0 : index
    %100 = vector.load %arg12[%c0_35, %c0_36] : memref<1x1xf32, #tpu.memory_space<vmem>>, vector<1x1xf32>
    tpu.vector_store %arg12[%c0_35, %c0_36], %99 {strides = array<i32>} : memref<1x1xf32, #tpu.memory_space<vmem>>, vector<1x1xf32>,
    %101 = vector.broadcast %5 : vector<1x1xf32> to vector<1x128xf32>
    %102 = arith.mulf %101, %38 : vector<1x128xf32>
    %cst_37 = arith.constant 1.000000e+00 : f32
    %103 = vector.broadcast %cst_37 : f32 to vector<1x1xf32>
    %104 = arith.subf %103, %5 : vector<1x1xf32>
    %105 = vector.broadcast %104 : vector<1x1xf32> to vector<1x128xf32>
    %106 = arith.mulf %105, %6 : vector<1x128xf32>
    %107 = arith.addf %102, %106 : vector<1x128xf32>
    %c0_38 = arith.constant 0 : index
    %c0_39 = arith.constant 0 : index
    %108 = vector.load %arg10[%c0_38, %c0_39] : memref<1x128xf32, #tpu.memory_space<vmem>>, vector<1x128xf32>
    tpu.vector_store %arg10[%c0_38, %c0_39], %107 {strides = array<i32>} : memref<1x128xf32, #tpu.memory_space<vmem>>, vector<1x128xf32>,
    %109 = vector.broadcast %5 : vector<1x1xf32> to vector<1x128xf32>
    %110 = arith.mulf %109, %86 : vector<1x128xf32>
    %cst_40 = arith.constant 1.000000e+00 : f32
    %111 = vector.broadcast %cst_40 : f32 to vector<1x1xf32>
    %112 = arith.subf %111, %5 : vector<1x1xf32>
    %c0_41 = arith.constant 0 : index
    %c0_42 = arith.constant 0 : index
    %113 = vector.load %arg11[%c0_41, %c0_42] : memref<1x128xf32, #tpu.memory_space<vmem>>, vector<1x128xf32>
    %114 = vector.broadcast %112 : vector<1x1xf32> to vector<1x128xf32>
    %115 = arith.mulf %114, %113 : vector<1x128xf32>
    %116 = arith.addf %110, %115 : vector<1x128xf32>
    %c0_43 = arith.constant 0 : index
    %c0_44 = arith.constant 0 : index
    %117 = vector.load %arg11[%c0_43, %c0_44] : memref<1x128xf32, #tpu.memory_space<vmem>>, vector<1x128xf32>
    tpu.vector_store %arg11[%c0_43, %c0_44], %116 {strides = array<i32>} : memref<1x128xf32, #tpu.memory_space<vmem>>, vector<1x128xf32>,
    return
  }
  func.func @transform_0(%arg0: i32, %arg1: memref<8x1xi32, #tpu.memory_space<smem>>, %arg2: memref<8xi32, #tpu.memory_space<smem>>) -> (i32, i32) {
    %c0_i32 = arith.constant 0 : i32
    %c0_i32_0 = arith.constant 0 : i32
    %c0_i32_1 = arith.constant 0 : i32
    return %c0_i32, %c0_i32_0 : i32, i32
  }
  func.func @transform_1(%arg0: i32, %arg1: memref<8x1xi32, #tpu.memory_space<smem>>, %arg2: memref<8xi32, #tpu.memory_space<smem>>) -> (i32, i32) {
    %c0_i32 = arith.constant 0 : i32
    %c0_i32_0 = arith.constant 0 : i32
    %c0_i32_1 = arith.constant 0 : i32
    return %c0_i32, %c0_i32_0 : i32, i32
  }
  func.func @transform_2(%arg0: i32, %arg1: memref<8x1xi32, #tpu.memory_space<smem>>, %arg2: memref<8xi32, #tpu.memory_space<smem>>) -> (i32, i32) {
    %c0_i32 = arith.constant 0 : i32
    %c0_i32_0 = arith.constant 0 : i32
    %c0_i32_1 = arith.constant 0 : i32
    return %c0_i32, %c0_i32_0 : i32, i32
  }
  func.func @transform_3(%arg0: i32, %arg1: memref<8x1xi32, #tpu.memory_space<smem>>, %arg2: memref<8xi32, #tpu.memory_space<smem>>) -> (i32, i32) {
    %c0_i32 = arith.constant 0 : i32
    %c0_i32_0 = arith.constant 0 : i32
    %c0_i32_1 = arith.constant 0 : i32
    return %c0_i32, %c0_i32_0 : i32, i32
  }
  func.func @transform_4(%arg0: i32, %arg1: memref<8x1xi32, #tpu.memory_space<smem>>, %arg2: memref<8xi32, #tpu.memory_space<smem>>) -> (i32, i32) {
    %c0_i32 = arith.constant 0 : i32
    %c0_i32_0 = arith.constant 0 : i32
    %c0_i32_1 = arith.constant 0 : i32
    return %c0_i32, %c0_i32_0 : i32, i32
  }
  func.func @transform_5(%arg0: i32, %arg1: memref<8x1xi32, #tpu.memory_space<smem>>, %arg2: memref<8xi32, #tpu.memory_space<smem>>) -> (i32, i32) {
    %c0_i32 = arith.constant 0 : i32
    %c0_i32_0 = arith.constant 0 : i32
    %c0_i32_1 = arith.constant 0 : i32
    return %c0_i32, %c0_i32_0 : i32, i32
  }
  func.func @transform_6(%arg0: i32, %arg1: memref<8x1xi32, #tpu.memory_space<smem>>, %arg2: memref<8xi32, #tpu.memory_space<smem>>) -> (i32, i32, i32) {
    %c0_i32 = arith.constant 0 : i32
    %c0_i32_0 = arith.constant 0 : i32
    %c0_i32_1 = arith.constant 0 : i32
    return %arg0, %c0_i32, %c0_i32_0 : i32, i32, i32
  }
}

module attributes {stable_mosaic.version = 11 : i64} {
  func.func @kernel(%arg0: i32, %arg1: memref<8x1xi32, #tpu.memory_space<smem>>, %arg2: memref<128x128xf32, #tpu.memory_space<vmem>>, %arg3: memref<256x512xf32, #tpu.memory_space<vmem>>, %arg4: memref<1x512xf32, #tpu.memory_space<vmem>>, %arg5: memref<1x128xf32, #tpu.memory_space<vmem>>) attributes {dimension_semantics = [#tpu.dimension_semantics<arbitrary>], iteration_bounds = array<i64: 8>, scalar_prefetch = 1 : i64, scratch_operands = 0 : i64, tpu.core_type = #tpu.core_type<tc>, window_params = [{pipeline_mode = #tpu.pipeline_mode<synchronous>, transform_indices = @transform_0, window_bounds = array<i64: 128, 128>}, {pipeline_mode = #tpu.pipeline_mode<synchronous>, transform_indices = @transform_1, window_bounds = array<i64: 256, 512>}, {pipeline_mode = #tpu.pipeline_mode<synchronous>, transform_indices = @transform_2, window_bounds = array<i64: 1, 512>}, {pipeline_mode = #tpu.pipeline_mode<synchronous>, transform_indices = @transform_3, window_bounds = array<i64: 1, 128>}]} {
    %c0_i32 = arith.constant 0 : i32
    %0 = arith.cmpi eq, %arg0, %c0_i32 : i32
    %1 = arith.extui %0 : i1 to i32
    %c0_i32_0 = arith.constant 0 : i32
    %2 = arith.cmpi ne, %1, %c0_i32_0 : i32
    scf.if %2 {
      %cst_15 = arith.constant 0.000000e+00 : f32
      %41 = vector.broadcast %cst_15 : f32 to vector<1x128xf32>
      %c0_16 = arith.constant 0 : index
      %c0_17 = arith.constant 0 : index
      %42 = vector.load %arg5[%c0_16, %c0_17] : memref<1x128xf32, #tpu.memory_space<vmem>>, vector<1x128xf32>
      tpu.vector_store %arg5[%c0_16, %c0_17], %41 {strides = array<i32>} : memref<1x128xf32, #tpu.memory_space<vmem>>, vector<1x128xf32>,
    } else {
    }
    %3 = tpu.iota {dimensions = array<i32: 1>} : vector<1x128xi32>
    %4 = arith.index_cast %arg0 : i32 to index
    %c0 = arith.constant 0 : index
    %5 = memref.load %arg1[%4, %c0] : memref<8x1xi32, #tpu.memory_space<smem>>
    %6 = vector.broadcast %5 : i32 to vector<1x128xi32>
    %7 = arith.cmpi eq, %3, %6 : vector<1x128xi32>
    %8 = arith.extui %7 : vector<1x128xi1> to vector<1x128xi32>
    %9 = arith.sitofp %8 : vector<1x128xi32> to vector<1x128xf32>
    %c0_1 = arith.constant 0 : index
    %c0_2 = arith.constant 0 : index
    %10 = vector.load %arg2[%c0_1, %c0_2] : memref<128x128xf32, #tpu.memory_space<vmem>>, vector<128x128xf32>
    %cst = arith.constant dense<0.000000e+00> : vector<1x128xf32>
    %11 = tpu.matmul %9, %10, %cst {dimension_numbers = #tpu.dot_dimension_numbers<[1], [0], [0], [1], [0, 0, 1, 1], [], []>} : vector<1x128xf32>, vector<128x128xf32>, vector<1x128xf32> -> vector<1x128xf32>
    %c0_3 = arith.constant 0 : index
    %c0_4 = arith.constant 0 : index
    %12 = vector.load %arg5[%c0_3, %c0_4] : memref<1x128xf32, #tpu.memory_space<vmem>>, vector<1x128xf32>
    %13 = tpu.concatenate %11, %12 in 1 : vector<1x128xf32>, vector<1x128xf32> -> vector<1x256xf32>
    %c0_5 = arith.constant 0 : index
    %c0_6 = arith.constant 0 : index
    %14 = vector.load %arg3[%c0_5, %c0_6] : memref<256x512xf32, #tpu.memory_space<vmem>>, vector<256x512xf32>
    %cst_7 = arith.constant dense<0.000000e+00> : vector<1x512xf32>
    %15 = tpu.matmul %13, %14, %cst_7 {dimension_numbers = #tpu.dot_dimension_numbers<[1], [0], [0], [1], [0, 0, 1, 1], [], []>} : vector<1x256xf32>, vector<256x512xf32>, vector<1x512xf32> -> vector<1x512xf32>
    %c0_8 = arith.constant 0 : index
    %c0_9 = arith.constant 0 : index
    %16 = vector.load %arg4[%c0_8, %c0_9] : memref<1x512xf32, #tpu.memory_space<vmem>>, vector<1x512xf32>
    %17 = arith.addf %15, %16 : vector<1x512xf32>
    %18 = vector.extract_strided_slice %17 {offsets = [0, 0], sizes = [1, 128], strides = [1, 1]} : vector<1x512xf32> to vector<1x128xf32>
    %19 = arith.negf %18 : vector<1x128xf32>
    %20 = math.exp %19 : vector<1x128xf32>
    %cst_10 = arith.constant 1.000000e+00 : f32
    %21 = vector.broadcast %cst_10 : f32 to vector<1x128xf32>
    %22 = arith.addf %21, %20 : vector<1x128xf32>
    %23 = arith.divf %21, %22 : vector<1x128xf32>
    %24 = vector.extract_strided_slice %17 {offsets = [0, 128], sizes = [1, 128], strides = [1, 1]} : vector<1x512xf32> to vector<1x128xf32>
    %25 = arith.negf %24 : vector<1x128xf32>
    %26 = math.exp %25 : vector<1x128xf32>
    %cst_11 = arith.constant 1.000000e+00 : f32
    %27 = vector.broadcast %cst_11 : f32 to vector<1x128xf32>
    %28 = arith.addf %27, %26 : vector<1x128xf32>
    %29 = arith.divf %27, %28 : vector<1x128xf32>
    %30 = vector.extract_strided_slice %17 {offsets = [0, 256], sizes = [1, 128], strides = [1, 1]} : vector<1x512xf32> to vector<1x128xf32>
    %31 = vector.extract_strided_slice %17 {offsets = [0, 384], sizes = [1, 128], strides = [1, 1]} : vector<1x512xf32> to vector<1x128xf32>
    %32 = arith.mulf %23, %31 : vector<1x128xf32>
    %33 = arith.addf %30, %32 : vector<1x128xf32>
    %34 = math.tanh %33 : vector<1x128xf32>
    %cst_12 = arith.constant 1.000000e+00 : f32
    %35 = vector.broadcast %cst_12 : f32 to vector<1x128xf32>
    %36 = arith.subf %35, %29 : vector<1x128xf32>
    %37 = arith.mulf %36, %34 : vector<1x128xf32>
    %38 = arith.mulf %29, %12 : vector<1x128xf32>
    %39 = arith.addf %37, %38 : vector<1x128xf32>
    %c0_13 = arith.constant 0 : index
    %c0_14 = arith.constant 0 : index
    %40 = vector.load %arg5[%c0_13, %c0_14] : memref<1x128xf32, #tpu.memory_space<vmem>>, vector<1x128xf32>
    tpu.vector_store %arg5[%c0_13, %c0_14], %39 {strides = array<i32>} : memref<1x128xf32, #tpu.memory_space<vmem>>, vector<1x128xf32>,
    return
  }
  func.func @transform_0(%arg0: i32, %arg1: memref<8x1xi32, #tpu.memory_space<smem>>) -> (i32, i32) {
    %c0_i32 = arith.constant 0 : i32
    %c0_i32_0 = arith.constant 0 : i32
    %c0_i32_1 = arith.constant 0 : i32
    return %c0_i32, %c0_i32_0 : i32, i32
  }
  func.func @transform_1(%arg0: i32, %arg1: memref<8x1xi32, #tpu.memory_space<smem>>) -> (i32, i32) {
    %c0_i32 = arith.constant 0 : i32
    %c0_i32_0 = arith.constant 0 : i32
    %c0_i32_1 = arith.constant 0 : i32
    return %c0_i32, %c0_i32_0 : i32, i32
  }
  func.func @transform_2(%arg0: i32, %arg1: memref<8x1xi32, #tpu.memory_space<smem>>) -> (i32, i32) {
    %c0_i32 = arith.constant 0 : i32
    %c0_i32_0 = arith.constant 0 : i32
    %c0_i32_1 = arith.constant 0 : i32
    return %c0_i32, %c0_i32_0 : i32, i32
  }
  func.func @transform_3(%arg0: i32, %arg1: memref<8x1xi32, #tpu.memory_space<smem>>) -> (i32, i32) {
    %c0_i32 = arith.constant 0 : i32
    %c0_i32_0 = arith.constant 0 : i32
    %c0_i32_1 = arith.constant 0 : i32
    return %c0_i32, %c0_i32_0 : i32, i32
  }
}

</mosaic_0001>

<llo_original>
// kernel: _forward_impl.3
$region0: #{_forward_impl.3}
  #allocation0 [shape = 'u32[]', space=smem, size = 0x4, offset = 0x4, fixed_abs, tag = 'smem constant byte address 0x4 - core index']
  #allocation1 [shape = 'u32[144,128]{1,0:T(1,128)}', space=vmem, size = 0x12000, scoped, tag = 'internal scratch']
  #allocation2 [shape = 'f32[1,128]{1,0:T(1,128)}', space=vmem, size = 0x200, scoped, tag = 'scratch operand']
  #allocation3 [shape = 'f32[1,128]{1,0:T(1,128)}', space=vmem, size = 0x200, scoped, tag = 'scratch operand']
  #allocation4 [shape = 'f32[1,1]{1,0:T(1,128)}', space=vmem, size = 0x200, scoped, tag = 'scratch operand']
  #allocation5 [shape = 's32[1]{0}', space=sflag, size = 0x4, scoped, tag = 'scoped memory for _forward_impl.3']
  #allocation6 [shape = 'u8[4096]{0}', space=smem, size = 0x1000, scoped, tag = 'prefetched SMEM operand 0']
  #allocation7 [shape = 'u8[512]{0}', space=smem, size = 0x200, scoped, tag = 'prefetched SMEM operand 1']
  %s0 = inlined_call_operand.vmem [shape: s32[8,1], index: 0, kind: input, shape index: {}]
  %s1 = inlined_call_operand.vmem [shape: s32[8], index: 1, kind: input, shape index: {}]
  %s2 = inlined_call_operand.vmem [shape: f32[1,128], index: 2, kind: input, shape index: {}]
  %s3 = inlined_call_operand.hbm [shape: f32[128,128], index: 3, kind: input, shape index: {}]
  %s4 = inlined_call_operand.vmem [shape: f32[256,512], index: 4, kind: input, shape index: {}]
  %s5 = inlined_call_operand.vmem [shape: f32[1,512], index: 5, kind: input, shape index: {}]
  %s6 = inlined_call_operand.vmem [shape: f32[128,128], index: 6, kind: input, shape index: {}]
  %s7 = inlined_call_operand.vmem [shape: f32[1,128], index: 7, kind: input, shape index: {}]
  %s8 = inlined_call_operand.hbm [shape: f32[8,1,128], index: 8, kind: output, shape index: {}]
  %s9 = sld [smem:[#allocation0]]
  $region65: #{_forward_impl.3} parent=0
    _
  %s11 = ssub.s32 1, %s9
  %s12 = scalar_select 0, %s11, %s9
  %s13 = sshll.u32 %s0, 4
  %s14 = int_to_ptr.vmem [resolvable:$true] %s13
  %16 = dma.vmem_to_smem %s14, 128, [#allocation6], [#allocation5]
  %s17 = sshll.u32 %s1, 4
  %s18 = int_to_ptr.vmem [resolvable:$true] %s17
  %20 = dma.vmem_to_smem %s18, 16, [#allocation7], [#allocation5]
  %21 = dma.done [#allocation5], 144
  %22 = sfence
  $region1: #{_forward_impl.3} parent=0
    #allocation8 [shape = 'u8[65536]{0}', space=vmem, size = 0x10000, scoped, tag = 'input window, operand 3, single buffered']
    #allocation9 [shape = 's32[2]{0}', space=sflag, size = 0x8, scoped, tag = 'scoped memory for _forward_impl.3']
    #allocation10 [shape = 's32[2]{0}', space=sflag, size = 0x8, scoped, tag = 'scoped memory for _forward_impl.3']
    #allocation11 [shape = 'u8[1024]{0}', space=vmem, size = 0x400, scoped, tag = 'output window, operand 0']
    %23 = vsyncpa [#allocation9], 0
    %24 = vsyncpa [#allocation10], 0
    %s25 = scalar_lea.sflag [#allocation10], 1
    %26 = vsyncpa %s25, 0
    loop: start=0, step=1, limit=10
    $region2: #{_forward_impl.3} parent=1 // loop_pre_header
      _
    $region3: #{_forward_impl.3} parent=1 // loop_header
      %s28 = sphi 0, %s32
      %p29 = scmp.ge.s32.totalorder %s28, 10
      %s36 = sphi 0, %s36
      %s38 = sphi 0, %s36
      %s39 = sphi 0, %s38
      %s53 = sphi 0, %s39
      %s57 = sphi 0, %s57
      %s59 = sphi 0, %s57
      %s60 = sphi 0, %s59
      %s74 = sphi 0, %s60
      %s78 = sphi 0, %s78
      %s80 = sphi 0, %s78
      %s81 = sphi 0, %s80
      %s95 = sphi 0, %s81
      %s99 = sphi 0, %s99
      %s101 = sphi 0, %s99
      %s102 = sphi 0, %s101
      %s116 = sphi 0, %s102
      %s120 = sphi 0, %s120
      %s122 = sphi 0, %s120
      %s123 = sphi 0, %s122
      %s137 = sphi 0, %s123
      %s141 = sphi 0, %s141
      %s143 = sphi 0, %s141
      %s144 = sphi 0, %s143
      %s158 = sphi 0, %s144
      %s164 = sphi 0, %s166
      %s167 = sphi 0, %s164
      %s168 = sphi 0, %s167
      %s184 = sphi 0, %s168
    $region4: #{_forward_impl.3} parent=1 // loop_header_branch
      %31 = sbr.rel (%p29) target = $region8
    $region5: #{_forward_impl.3} parent=1 // loop_body
      %s33 = ssub.s32 %s28, 1
      %s34 = ssub.s32 %s28, 2
      %s35 = sadd.s32 %s28, 1
      %s37 = sadd.s32 %s36, 1
      %p40 = scmp.eq.s32.totalorder %s28, 7
      %p41 = scmp.ne.s32.totalorder %s36, %s38
      %p42 = scmp.eq.s32.totalorder %s28, 0
      %p43 = por %p41, %p42
      %p44 = scmp.ne.s32.totalorder %s36, %s38
      %p45 = scmp.eq.s32.totalorder %s33, 7
      %p46 = por %p44, %p45
      %p47 = scmp.ne.s32.totalorder %s38, %s39
      %p48 = scmp.eq.s32.totalorder %s33, 0
      %p49 = por %p47, %p48
      %p50 = scmp.ne.s32.totalorder %s38, %s39
      %p51 = scmp.eq.s32.totalorder %s34, 7
      %p52 = por %p50, %p51
      %p54 = scmp.ne.s32.totalorder %s39, %s53
      %p55 = scmp.eq.s32.totalorder %s34, 0
      %p56 = por %p54, %p55
      %s58 = sadd.s32 %s57, 1
      %p61 = scmp.eq.s32.totalorder %s28, 7
      %p62 = scmp.ne.s32.totalorder %s57, %s59
      %p63 = scmp.eq.s32.totalorder %s28, 0
      %p64 = por %p62, %p63
      %p65 = scmp.ne.s32.totalorder %s57, %s59
      %p66 = scmp.eq.s32.totalorder %s33, 7
      %p67 = por %p65, %p66
      %p68 = scmp.ne.s32.totalorder %s59, %s60
      %p69 = scmp.eq.s32.totalorder %s33, 0
      %p70 = por %p68, %p69
      %p71 = scmp.ne.s32.totalorder %s59, %s60
      %p72 = scmp.eq.s32.totalorder %s34, 7
      %p73 = por %p71, %p72
      %p75 = scmp.ne.s32.totalorder %s60, %s74
      %p76 = scmp.eq.s32.totalorder %s34, 0
      %p77 = por %p75, %p76
      %s79 = sadd.s32 %s78, 1
      %p82 = scmp.eq.s32.totalorder %s28, 7
      %p83 = scmp.ne.s32.totalorder %s78, %s80
      %p84 = scmp.eq.s32.totalorder %s28, 0
      %p85 = por %p83, %p84
      %p86 = scmp.ne.s32.totalorder %s78, %s80
      %p87 = scmp.eq.s32.totalorder %s33, 7
      %p88 = por %p86, %p87
      %p89 = scmp.ne.s32.totalorder %s80, %s81
      %p90 = scmp.eq.s32.totalorder %s33, 0
      %p91 = por %p89, %p90
      %p92 = scmp.ne.s32.totalorder %s80, %s81
      %p93 = scmp.eq.s32.totalorder %s34, 7
      %p94 = por %p92, %p93
      %p96 = scmp.ne.s32.totalorder %s81, %s95
      %p97 = scmp.eq.s32.totalorder %s34, 0
      %p98 = por %p96, %p97
      %s100 = sadd.s32 %s99, 1
      %p103 = scmp.eq.s32.totalorder %s28, 7
      %p104 = scmp.ne.s32.totalorder %s99, %s101
      %p105 = scmp.eq.s32.totalorder %s28, 0
      %p106 = por %p104, %p105
      %p107 = scmp.ne.s32.totalorder %s99, %s101
      %p108 = scmp.eq.s32.totalorder %s33, 7
      %p109 = por %p107, %p108
      %p110 = scmp.ne.s32.totalorder %s101, %s102
      %p111 = scmp.eq.s32.totalorder %s33, 0
      %p112 = por %p110, %p111
      %p113 = scmp.ne.s32.totalorder %s101, %s102
      %p114 = scmp.eq.s32.totalorder %s34, 7
      %p115 = por %p113, %p114
      %p117 = scmp.ne.s32.totalorder %s102, %s116
      %p118 = scmp.eq.s32.totalorder %s34, 0
      %p119 = por %p117, %p118
      %s121 = sadd.s32 %s120, 1
      %p124 = scmp.eq.s32.totalorder %s28, 7
      %p125 = scmp.ne.s32.totalorder %s120, %s122
      %p126 = scmp.eq.s32.totalorder %s28, 0
      %p127 = por %p125, %p126
      %p128 = scmp.ne.s32.totalorder %s120, %s122
      %p129 = scmp.eq.s32.totalorder %s33, 7
      %p130 = por %p128, %p129
      %p131 = scmp.ne.s32.totalorder %s122, %s123
      %p132 = scmp.eq.s32.totalorder %s33, 0
      %p133 = por %p131, %p132
      %p134 = scmp.ne.s32.totalorder %s122, %s123
      %p135 = scmp.eq.s32.totalorder %s34, 7
      %p136 = por %p134, %p135
      %p138 = scmp.ne.s32.totalorder %s123, %s137
      %p139 = scmp.eq.s32.totalorder %s34, 0
      %p140 = por %p138, %p139
      %s142 = sadd.s32 %s141, 1
      %p145 = scmp.eq.s32.totalorder %s28, 7
      %p146 = scmp.ne.s32.totalorder %s141, %s143
      %p147 = scmp.eq.s32.totalorder %s28, 0
      %p148 = por %p146, %p147
      %p149 = scmp.ne.s32.totalorder %s141, %s143
      %p150 = scmp.eq.s32.totalorder %s33, 7
      %p151 = por %p149, %p150
      %p152 = scmp.ne.s32.totalorder %s143, %s144
      %p153 = scmp.eq.s32.totalorder %s33, 0
      %p154 = por %p152, %p153
      %p155 = scmp.ne.s32.totalorder %s143, %s144
      %p156 = scmp.eq.s32.totalorder %s34, 7
      %p157 = por %p155, %p156
      %p159 = scmp.ne.s32.totalorder %s144, %s158
      %p160 = scmp.eq.s32.totalorder %s34, 0
      %p161 = por %p159, %p160
      %s162 = ssub.s32 %s28, %s35
      %p163 = scmp.eq.s32.totalorder %s162, 0
      %s165 = sadd.s32 %s164, 1
      %s166 = scalar_select %p163, %s164, %s165
      %p169 = pneg %p163
      %p170 = scmp.eq.s32.totalorder %s28, 7
      %p171 = por %p169, %p170
      %p172 = scmp.ne.s32.totalorder %s164, %s167
      %p173 = scmp.eq.s32.totalorder %s28, 0
      %p174 = por %p172, %p173
      %p175 = scmp.ne.s32.totalorder %s164, %s167
      %p176 = scmp.eq.s32.totalorder %s33, 7
      %p177 = por %p175, %p176
      %p178 = scmp.ne.s32.totalorder %s167, %s168
      %p179 = scmp.eq.s32.totalorder %s33, 0
      %p180 = por %p178, %p179
      %p181 = scmp.ne.s32.totalorder %s167, %s168
      %p182 = scmp.eq.s32.totalorder %s34, 7
      %p183 = por %p181, %p182
      %p185 = scmp.ne.s32.totalorder %s168, %s184
      %p186 = scmp.eq.s32.totalorder %s34, 0
      %p187 = por %p185, %p186
      %p188 = scmp.le.s32.totalorder 1, %s28
      %p189 = scmp.lt.s32.totalorder %s28, 9
      %p190 = pnand %p188, %p189
      %p191 = pneg %p190
      // Predicated region
      $region9: #{_forward_impl.3} parent=5 // pred_check
        _
      $region10: #{_forward_impl.3} parent=5 // pred_check_branch
        %193 = sbr.rel (%p190) target = $region12
      $region11: #{_forward_impl.3} parent=5 // pred_region
        %s194 = ssub.s32 %s28, 1
        // Predicated region
        $region13: #{_forward_impl.3} parent=11 // pred_check
          %p195 = pneg %p49
        $region14: #{_forward_impl.3} parent=11 // pred_check_branch
          %197 = sbr.rel (%p195) target = $region16
        $region15: #{_forward_impl.3} parent=11 // pred_region
          _
        $region16: #{_forward_impl.3} parent=11 // pred_fallthru
          _
        // Predicated region
        $region17: #{_forward_impl.3} parent=11 // pred_check
          %p198 = pneg %p70
        $region18: #{_forward_impl.3} parent=11 // pred_check_branch
          %200 = sbr.rel (%p198) target = $region20
        $region19: #{_forward_impl.3} parent=11 // pred_region
          %s202 = ssub.s32 2048, 2048
          %203 = vsyncadd [#allocation9], %s202
          %s204 = sshll.u32 [#allocation8], 4
          %s205 = int_to_ptr.vmem [resolvable:$true] %s204
          %210 = dma.hbm_to_vmem [thread:$0]  %s3, 2048, %s205, [#allocation9], 128, 128, 8
        $region20: #{_forward_impl.3} parent=11 // pred_fallthru
          _
        // Predicated region
        $region21: #{_forward_impl.3} parent=11 // pred_check
          %p211 = pneg %p91
        $region22: #{_forward_impl.3} parent=11 // pred_check_branch
          %213 = sbr.rel (%p211) target = $region24
        $region23: #{_forward_impl.3} parent=11 // pred_region
          _
        $region24: #{_forward_impl.3} parent=11 // pred_fallthru
          _
        // Predicated region
        $region25: #{_forward_impl.3} parent=11 // pred_check
          %p214 = pneg %p112
        $region26: #{_forward_impl.3} parent=11 // pred_check_branch
          %216 = sbr.rel (%p214) target = $region28
        $region27: #{_forward_impl.3} parent=11 // pred_region
          _
        $region28: #{_forward_impl.3} parent=11 // pred_fallthru
          _
        // Predicated region
        $region29: #{_forward_impl.3} parent=11 // pred_check
          %p217 = pneg %p133
        $region30: #{_forward_impl.3} parent=11 // pred_check_branch
          %219 = sbr.rel (%p217) target = $region32
        $region31: #{_forward_impl.3} parent=11 // pred_region
          _
        $region32: #{_forward_impl.3} parent=11 // pred_fallthru
          _
        // Predicated region
        $region33: #{_forward_impl.3} parent=11 // pred_check
          %p220 = pneg %p154
        $region34: #{_forward_impl.3} parent=11 // pred_check_branch
          %222 = sbr.rel (%p220) target = $region36
        $region35: #{_forward_impl.3} parent=11 // pred_region
          _
        $region36: #{_forward_impl.3} parent=11 // pred_fallthru
          _
      $region12: #{_forward_impl.3} parent=5 // pred_fallthru
        _
      %p223 = scmp.lt.s32.totalorder %s28, 8
      // Predicated region
      $region37: #{_forward_impl.3} parent=5 // pred_check
        %p224 = pneg %p223
      $region38: #{_forward_impl.3} parent=5 // pred_check_branch
        %226 = sbr.rel (%p224) target = $region40
      $region39: #{_forward_impl.3} parent=5 // pred_region
        _
      $region40: #{_forward_impl.3} parent=5 // pred_fallthru
        _
      %p227 = scmp.le.s32.totalorder 1, %s28
      %p228 = scmp.lt.s32.totalorder %s28, 9
      %p229 = pnand %p227, %p228
      %p230 = pneg %p229
      // Predicated region
      $region41: #{_forward_impl.3} parent=5 // pred_check
        _
      $region42: #{_forward_impl.3} parent=5 // pred_check_branch
        %232 = sbr.rel (%p229) target = $region44
      $region43: #{_forward_impl.3} parent=5 // pred_region
        %s233 = ssub.s32 %s28, 1
        // Predicated region
        $region45: #{_forward_impl.3} parent=43 // pred_check
          %p234 = pneg %p70
        $region46: #{_forward_impl.3} parent=43 // pred_check_branch
          %236 = sbr.rel (%p234) target = $region48
        $region47: #{_forward_impl.3} parent=43 // pred_region
          %237 = dma.done [#allocation9], 2048
        $region48: #{_forward_impl.3} parent=43 // pred_fallthru
          _
        %p238 = pneg %p49
        %p239 = pneg %p46
        %p240 = pneg %p70
        %p241 = pneg %p67
        %p242 = pneg %p91
        %p243 = pneg %p88
        %p244 = pneg %p112
        %p245 = pneg %p109
        %p246 = pneg %p133
        %p247 = pneg %p130
        %p248 = pneg %p154
        %p249 = pneg %p151
        %p250 = pneg %p180
        %p251 = pneg %p177
        %s252 = sand.u32 %s167, 1
        %s253 = scalar_lea.sflag [#allocation10], %s252
        %s254 = sand.u32 %s167, 1
        %s255 = scalar_lea.vmem [#allocation11], %s254
        %v256 = vlaneseq
        %v257 = vand.u32 %v256, 127
        %v258 = vcvt.s32.f32 %v257
        %p259 = scmp.eq.s32.totalorder %s33, 0
        // Predicated region
        $region49: #{_forward_impl.3} parent=43 // pred_check
          %p260 = pneg %p259
        $region50: #{_forward_impl.3} parent=43 // pred_check_branch
          %262 = sbr.rel (%p260) target = $region52
        $region51: #{_forward_impl.3} parent=43 // pred_region
          %v263 = vld [vmem:[%s2] sm:$0x1]
          %264 = vst [vmem:[#allocation2] sm:$0x1] %v263
          %vm265 = vcmp.eq.s32.totalorder %v257, 0
          %v266 = vsel %vm265, 1, 0
          %v267 = vcvt.s32.f32 %v266
          %268 = vst [vmem:[#allocation3] sm:$0x1] %v267
          %vm269 = vcmask 0
          %270 = vst.msk [vmem:[#allocation4] sm:$0x1] %vm269, 1.0
        $region52: #{_forward_impl.3} parent=43 // pred_fallthru
          _
        %v271 = vld [vmem:[#allocation4] sm:$0x1]
        %v272 = vld [vmem:[#allocation2] sm:$0x1]
        %v273 = vld [vmem:[#allocation3] sm:$0x1]
        %v274 = vld [vmem:[#allocation8] sm:$0xff]
        %v275 = vld [vmem:[#allocation8 + $0x8] sm:$0xff]
        %v276 = vld [vmem:[#allocation8 + $0x10] sm:$0xff]
        %v277 = vld [vmem:[#allocation8 + $0x18] sm:$0xff]
        %v278 = vld [vmem:[#allocation8 + $0x20] sm:$0xff]
        %v279 = vld [vmem:[#allocation8 + $0x28] sm:$0xff]
        %v280 = vld [vmem:[#allocation8 + $0x30] sm:$0xff]
        %v281 = vld [vmem:[#allocation8 + $0x38] sm:$0xff]
        %v282 = vld [vmem:[#allocation8 + $0x40] sm:$0xff]
        %v283 = vld [vmem:[#allocation8 + $0x48] sm:$0xff]
        %v284 = vld [vmem:[#allocation8 + $0x50] sm:$0xff]
        %v285 = vld [vmem:[#allocation8 + $0x58] sm:$0xff]
        %v286 = vld [vmem:[#allocation8 + $0x60] sm:$0xff]
        %v287 = vld [vmem:[#allocation8 + $0x68] sm:$0xff]
        %v288 = vld [vmem:[#allocation8 + $0x70] sm:$0xff]
        %v289 = vld [vmem:[#allocation8 + $0x78] sm:$0xff]
        %290 = vmatprep.subr.mxu0 0.0
        %291 = vmatpush1.msra.mxu0 %v274
        %292 = vmatprep.subr.mxu0 0.0
        %293 = vmatpush1.msra.mxu0 %v275
        %294 = vmatprep.subr.mxu0 0.0
        %295 = vmatpush1.msra.mxu0 %v276
        %296 = vmatprep.subr.mxu0 0.0
        %297 = vmatpush1.msra.mxu0 %v277
        %298 = vmatprep.subr.mxu0 0.0
        %299 = vmatpush1.msra.mxu0 %v278
        %300 = vmatprep.subr.mxu0 0.0
        %301 = vmatpush1.msra.mxu0 %v279
        %302 = vmatprep.subr.mxu0 0.0
        %303 = vmatpush1.msra.mxu0 %v280
        %304 = vmatprep.subr.mxu0 0.0
        %305 = vmatpush1.msra.mxu0 %v281
        %306 = vmatprep.subr.mxu0 0.0
        %307 = vmatpush1.msra.mxu0 %v282
        %308 = vmatprep.subr.mxu0 0.0
        %309 = vmatpush1.msra.mxu0 %v283
        %310 = vmatprep.subr.mxu0 0.0
        %311 = vmatpush1.msra.mxu0 %v284
        %312 = vmatprep.subr.mxu0 0.0
        %313 = vmatpush1.msra.mxu0 %v285
        %314 = vmatprep.subr.mxu0 0.0
        %315 = vmatpush1.msra.mxu0 %v286
        %316 = vmatprep.subr.mxu0 0.0
        %317 = vmatpush1.msra.mxu0 %v287
        %318 = vmatprep.subr.mxu0 0.0
        %319 = vmatpush1.msra.mxu0 %v288
        %320 = vmatprep.subr.mxu0 0.0
        %321 = vmatpush1.msra.mxu0 %v289
        %322 = vmatprep.subr.mxu0 0.0
        %323 = vmatpush1.msra.mxu0 0.0
        %324 = vmatprep.subr.mxu0 0.0
        %325 = vmatpush1.msra.mxu0 0.0
        %326 = vmatprep.subr.mxu0 0.0
        %327 = vmatpush1.msra.mxu0 0.0
        %328 = vmatprep.subr.mxu0 0.0
        %329 = vmatpush1.msra.mxu0 0.0
        %330 = vmatprep.subr.mxu0 0.0
        %331 = vmatpush1.msra.mxu0 0.0
        %332 = vmatprep.subr.mxu0 0.0
        %333 = vmatpush1.msra.mxu0 0.0
        %334 = vmatprep.subr.mxu0 0.0
        %335 = vmatpush1.msra.mxu0 0.0
        %336 = vmatprep.subr.mxu0 0.0
        %337 = vmatpush1.msra.mxu0 0.0
        %338 = vmatprep.subr.mxu0 0.0
        %339 = vmatpush1.msra.mxu0 0.0
        %340 = vmatprep.subr.mxu0 0.0
        %341 = vmatpush1.msra.mxu0 0.0
        %342 = vmatprep.subr.mxu0 0.0
        %343 = vmatpush1.msra.mxu0 0.0
        %344 = vmatprep.subr.mxu0 0.0
        %345 = vmatpush1.msra.mxu0 0.0
        %346 = vmatprep.subr.mxu0 0.0
        %347 = vmatpush1.msra.mxu0 0.0
        %348 = vmatprep.subr.mxu0 0.0
        %349 = vmatpush1.msra.mxu0 0.0
        %350 = vmatprep.subr.mxu0 0.0
        %351 = vmatpush1.msra.mxu0 0.0
        %352 = vmatprep.subr.mxu0 0.0
        %353 = vmatpush1.msra.mxu0 0.0
        %354 = vmatprep.mubr.f32.mxu0 0.0
        %355 = vmatmul.mubr.f32.gmra.mrb[0].mxu0 %v273
        %v356 = vpop.f32.mrb[0].mxu0
        %v357 = vadd.f32 0.0, %v356
        %v358 = vpop.f32.mrb[0].mxu0
        %359 = vdwg.mxu0
        %v360 = vmax.f32 %v357, 0.0
        %v361 = vld [vmem:[%s4] sm:$0xff]
        %v362 = vld [vmem:[%s4 + $0x8] sm:$0xff]
        %v363 = vld [vmem:[%s4 + $0x10] sm:$0xff]
        %v364 = vld [vmem:[%s4 + $0x18] sm:$0xff]
        %v365 = vld [vmem:[%s4 + $0x20] sm:$0xff]
        %v366 = vld [vmem:[%s4 + $0x28] sm:$0xff]
        %v367 = vld [vmem:[%s4 + $0x30] sm:$0xff]
        %v368 = vld [vmem:[%s4 + $0x38] sm:$0xff]
        %v369 = vld [vmem:[%s4 + $0x40] sm:$0xff]
        %v370 = vld [vmem:[%s4 + $0x48] sm:$0xff]
        %v371 = vld [vmem:[%s4 + $0x50] sm:$0xff]
        %v372 = vld [vmem:[%s4 + $0x58] sm:$0xff]
        %v373 = vld [vmem:[%s4 + $0x60] sm:$0xff]
        %v374 = vld [vmem:[%s4 + $0x68] sm:$0xff]
        %v375 = vld [vmem:[%s4 + $0x70] sm:$0xff]
        %v376 = vld [vmem:[%s4 + $0x78] sm:$0xff]
        %v377 = vld [vmem:[%s4 + $0x80] sm:$0xff]
        %v378 = vld [vmem:[%s4 + $0x88] sm:$0xff]
        %v379 = vld [vmem:[%s4 + $0x90] sm:$0xff]
        %v380 = vld [vmem:[%s4 + $0x98] sm:$0xff]
        %v381 = vld [vmem:[%s4 + $0xa0] sm:$0xff]
        %v382 = vld [vmem:[%s4 + $0xa8] sm:$0xff]
        %v383 = vld [vmem:[%s4 + $0xb0] sm:$0xff]
        %v384 = vld [vmem:[%s4 + $0xb8] sm:$0xff]
        %v385 = vld [vmem:[%s4 + $0xc0] sm:$0xff]
        %v386 = vld [vmem:[%s4 + $0xc8] sm:$0xff]
        %v387 = vld [vmem:[%s4 + $0xd0] sm:$0xff]
        %v388 = vld [vmem:[%s4 + $0xd8] sm:$0xff]
        %v389 = vld [vmem:[%s4 + $0xe0] sm:$0xff]
        %v390 = vld [vmem:[%s4 + $0xe8] sm:$0xff]
        %v391 = vld [vmem:[%s4 + $0xf0] sm:$0xff]
        %v392 = vld [vmem:[%s4 + $0xf8] sm:$0xff]
        %v393 = vld [vmem:[%s4 + $0x100] sm:$0xff]
        %v394 = vld [vmem:[%s4 + $0x108] sm:$0xff]
        %v395 = vld [vmem:[%s4 + $0x110] sm:$0xff]
        %v396 = vld [vmem:[%s4 + $0x118] sm:$0xff]
        %v397 = vld [vmem:[%s4 + $0x120] sm:$0xff]
        %v398 = vld [vmem:[%s4 + $0x128] sm:$0xff]
        %v399 = vld [vmem:[%s4 + $0x130] sm:$0xff]
        %v400 = vld [vmem:[%s4 + $0x138] sm:$0xff]
        %v401 = vld [vmem:[%s4 + $0x140] sm:$0xff]
        %v402 = vld [vmem:[%s4 + $0x148] sm:$0xff]
        %v403 = vld [vmem:[%s4 + $0x150] sm:$0xff]
        %v404 = vld [vmem:[%s4 + $0x158] sm:$0xff]
        %v405 = vld [vmem:[%s4 + $0x160] sm:$0xff]
        %v406 = vld [vmem:[%s4 + $0x168] sm:$0xff]
        %v407 = vld [vmem:[%s4 + $0x170] sm:$0xff]
        %v408 = vld [vmem:[%s4 + $0x178] sm:$0xff]
        %v409 = vld [vmem:[%s4 + $0x180] sm:$0xff]
        %v410 = vld [vmem:[%s4 + $0x188] sm:$0xff]
        %v411 = vld [vmem:[%s4 + $0x190] sm:$0xff]
        %v412 = vld [vmem:[%s4 + $0x198] sm:$0xff]
        %v413 = vld [vmem:[%s4 + $0x1a0] sm:$0xff]
        %v414 = vld [vmem:[%s4 + $0x1a8] sm:$0xff]
        %v415 = vld [vmem:[%s4 + $0x1b0] sm:$0xff]
        %v416 = vld [vmem:[%s4 + $0x1b8] sm:$0xff]
        %v417 = vld [vmem:[%s4 + $0x1c0] sm:$0xff]
        %v418 = vld [vmem:[%s4 + $0x1c8] sm:$0xff]
        %v419 = vld [vmem:[%s4 + $0x1d0] sm:$0xff]
        %v420 = vld [vmem:[%s4 + $0x1d8] sm:$0xff]
        %v421 = vld [vmem:[%s4 + $0x1e0] sm:$0xff]
        %v422 = vld [vmem:[%s4 + $0x1e8] sm:$0xff]
        %v423 = vld [vmem:[%s4 + $0x1f0] sm:$0xff]
        %v424 = vld [vmem:[%s4 + $0x1f8] sm:$0xff]
        %v425 = vld [vmem:[%s4 + $0x200] sm:$0xff]
        %v426 = vld [vmem:[%s4 + $0x208] sm:$0xff]
        %v427 = vld [vmem:[%s4 + $0x210] sm:$0xff]
        %v428 = vld [vmem:[%s4 + $0x218] sm:$0xff]
        %v429 = vld [vmem:[%s4 + $0x220] sm:$0xff]
        %v430 = vld [vmem:[%s4 + $0x228] sm:$0xff]
        %v431 = vld [vmem:[%s4 + $0x230] sm:$0xff]
        %v432 = vld [vmem:[%s4 + $0x238] sm:$0xff]
        %v433 = vld [vmem:[%s4 + $0x240] sm:$0xff]
        %v434 = vld [vmem:[%s4 + $0x248] sm:$0xff]
        %v435 = vld [vmem:[%s4 + $0x250] sm:$0xff]
        %v436 = vld [vmem:[%s4 + $0x258] sm:$0xff]
        %v437 = vld [vmem:[%s4 + $0x260] sm:$0xff]
        %v438 = vld [vmem:[%s4 + $0x268] sm:$0xff]
        %v439 = vld [vmem:[%s4 + $0x270] sm:$0xff]
        %v440 = vld [vmem:[%s4 + $0x278] sm:$0xff]
        %v441 = vld [vmem:[%s4 + $0x280] sm:$0xff]
        %v442 = vld [vmem:[%s4 + $0x288] sm:$0xff]
        %v443 = vld [vmem:[%s4 + $0x290] sm:$0xff]
        %v444 = vld [vmem:[%s4 + $0x298] sm:$0xff]
        %v445 = vld [vmem:[%s4 + $0x2a0] sm:$0xff]
        %v446 = vld [vmem:[%s4 + $0x2a8] sm:$0xff]
        %v447 = vld [vmem:[%s4 + $0x2b0] sm:$0xff]
        %v448 = vld [vmem:[%s4 + $0x2b8] sm:$0xff]
        %v449 = vld [vmem:[%s4 + $0x2c0] sm:$0xff]
        %v450 = vld [vmem:[%s4 + $0x2c8] sm:$0xff]
        %v451 = vld [vmem:[%s4 + $0x2d0] sm:$0xff]
        %v452 = vld [vmem:[%s4 + $0x2d8] sm:$0xff]
        %v453 = vld [vmem:[%s4 + $0x2e0] sm:$0xff]
        %v454 = vld [vmem:[%s4 + $0x2e8] sm:$0xff]
        %v455 = vld [vmem:[%s4 + $0x2f0] sm:$0xff]
        %v456 = vld [vmem:[%s4 + $0x2f8] sm:$0xff]
        %v457 = vld [vmem:[%s4 + $0x300] sm:$0xff]
        %v458 = vld [vmem:[%s4 + $0x308] sm:$0xff]
        %v459 = vld [vmem:[%s4 + $0x310] sm:$0xff]
        %v460 = vld [vmem:[%s4 + $0x318] sm:$0xff]
        %v461 = vld [vmem:[%s4 + $0x320] sm:$0xff]
        %v462 = vld [vmem:[%s4 + $0x328] sm:$0xff]
        %v463 = vld [vmem:[%s4 + $0x330] sm:$0xff]
        %v464 = vld [vmem:[%s4 + $0x338] sm:$0xff]
        %v465 = vld [vmem:[%s4 + $0x340] sm:$0xff]
        %v466 = vld [vmem:[%s4 + $0x348] sm:$0xff]
        %v467 = vld [vmem:[%s4 + $0x350] sm:$0xff]
        %v468 = vld [vmem:[%s4 + $0x358] sm:$0xff]
        %v469 = vld [vmem:[%s4 + $0x360] sm:$0xff]
        %v470 = vld [vmem:[%s4 + $0x368] sm:$0xff]
        %v471 = vld [vmem:[%s4 + $0x370] sm:$0xff]
        %v472 = vld [vmem:[%s4 + $0x378] sm:$0xff]
        %v473 = vld [vmem:[%s4 + $0x380] sm:$0xff]
        %v474 = vld [vmem:[%s4 + $0x388] sm:$0xff]
        %v475 = vld [vmem:[%s4 + $0x390] sm:$0xff]
        %v476 = vld [vmem:[%s4 + $0x398] sm:$0xff]
        %v477 = vld [vmem:[%s4 + $0x3a0] sm:$0xff]
        %v478 = vld [vmem:[%s4 + $0x3a8] sm:$0xff]
        %v479 = vld [vmem:[%s4 + $0x3b0] sm:$0xff]
        %v480 = vld [vmem:[%s4 + $0x3b8] sm:$0xff]
        %v481 = vld [vmem:[%s4 + $0x3c0] sm:$0xff]
        %v482 = vld [vmem:[%s4 + $0x3c8] sm:$0xff]
        %v483 = vld [vmem:[%s4 + $0x3d0] sm:$0xff]
        %v484 = vld [vmem:[%s4 + $0x3d8] sm:$0xff]
        %v485 = vld [vmem:[%s4 + $0x3e0] sm:$0xff]
        %v486 = vld [vmem:[%s4 + $0x3e8] sm:$0xff]
        %v487 = vld [vmem:[%s4 + $0x3f0] sm:$0xff]
        %v488 = vld [vmem:[%s4 + $0x3f8] sm:$0xff]
        %v489 = vld [vmem:[%s5] sm:$0xf]
        %v491 = vlaneseq
        %v492 = vshrl.u32 %v491, 7
        %v493 = vsub.s32 0, %v492
        %v494 = vrot.slane %v489, %v493
        %v495 = vlaneseq
        %v496 = vshrl.u32 %v495, 7
        %v497 = vsub.s32 1, %v496
        %v498 = vrot.slane %v489, %v497
        %v499 = vlaneseq
        %v500 = vshrl.u32 %v499, 7
        %v501 = vsub.s32 2, %v500
        %v502 = vrot.slane %v489, %v501
        %v503 = vlaneseq
        %v504 = vshrl.u32 %v503, 7
        %v505 = vsub.s32 3, %v504
        %v506 = vrot.slane %v489, %v505
        %511 = vmatprep.subr.mxu0 %v362
        %512 = vmatpush1.msra.mxu0 %v361
        %513 = vmatprep.subr.mxu0 %v366
        %514 = vmatpush1.msra.mxu0 %v365
        %515 = vmatprep.subr.mxu0 %v370
        %516 = vmatpush1.msra.mxu0 %v369
        %517 = vmatprep.subr.mxu0 %v374
        %518 = vmatpush1.msra.mxu0 %v373
        %519 = vmatprep.subr.mxu0 %v378
        %520 = vmatpush1.msra.mxu0 %v377
        %521 = vmatprep.subr.mxu0 %v382
        %522 = vmatpush1.msra.mxu0 %v381
        %523 = vmatprep.subr.mxu0 %v386
        %524 = vmatpush1.msra.mxu0 %v385
        %525 = vmatprep.subr.mxu0 %v390
        %526 = vmatpush1.msra.mxu0 %v389
        %527 = vmatprep.subr.mxu0 %v394
        %528 = vmatpush1.msra.mxu0 %v393
        %529 = vmatprep.subr.mxu0 %v398
        %530 = vmatpush1.msra.mxu0 %v397
        %531 = vmatprep.subr.mxu0 %v402
        %532 = vmatpush1.msra.mxu0 %v401
        %533 = vmatprep.subr.mxu0 %v406
        %534 = vmatpush1.msra.mxu0 %v405
        %535 = vmatprep.subr.mxu0 %v410
        %536 = vmatpush1.msra.mxu0 %v409
        %537 = vmatprep.subr.mxu0 %v414
        %538 = vmatpush1.msra.mxu0 %v413
        %539 = vmatprep.subr.mxu0 %v418
        %540 = vmatpush1.msra.mxu0 %v417
        %541 = vmatprep.subr.mxu0 %v422
        %542 = vmatpush1.msra.mxu0 %v421
        %543 = vmatprep.subr.mxu0 %v426
        %544 = vmatpush1.msra.mxu0 %v425
        %545 = vmatprep.subr.mxu0 %v430
        %546 = vmatpush1.msra.mxu0 %v429
        %547 = vmatprep.subr.mxu0 %v434
        %548 = vmatpush1.msra.mxu0 %v433
        %549 = vmatprep.subr.mxu0 %v438
        %550 = vmatpush1.msra.mxu0 %v437
        %551 = vmatprep.subr.mxu0 %v442
        %552 = vmatpush1.msra.mxu0 %v441
        %553 = vmatprep.subr.mxu0 %v446
        %554 = vmatpush1.msra.mxu0 %v445
        %555 = vmatprep.subr.mxu0 %v450
        %556 = vmatpush1.msra.mxu0 %v449
        %557 = vmatprep.subr.mxu0 %v454
        %558 = vmatpush1.msra.mxu0 %v453
        %559 = vmatprep.subr.mxu0 %v458
        %560 = vmatpush1.msra.mxu0 %v457
        %561 = vmatprep.subr.mxu0 %v462
        %562 = vmatpush1.msra.mxu0 %v461
        %563 = vmatprep.subr.mxu0 %v466
        %564 = vmatpush1.msra.mxu0 %v465
        %565 = vmatprep.subr.mxu0 %v470
        %566 = vmatpush1.msra.mxu0 %v469
        %567 = vmatprep.subr.mxu0 %v474
        %568 = vmatpush1.msra.mxu0 %v473
        %569 = vmatprep.subr.mxu0 %v478
        %570 = vmatpush1.msra.mxu0 %v477
        %571 = vmatprep.subr.mxu0 %v482
        %572 = vmatpush1.msra.mxu0 %v481
        %573 = vmatprep.subr.mxu0 %v486
        %574 = vmatpush1.msra.mxu0 %v485
        %575 = vmatprep.mubr.f32.mxu0 %v272
        %576 = vmatmul.mubr.f32.gmra.mrb[0].mxu0 %v360
        %v577 = vpop.f32.mrb[0].mxu0
        %v578 = vadd.f32 %v494, %v577
        %v579 = vpop.f32.mrb[0].mxu0
        %v580 = vadd.f32 %v498, %v579
        %581 = vdwg.mxu0
        %582 = vmatprep.subr.mxu0 %v364
        %583 = vmatpush1.msra.mxu0 %v363
        %584 = vmatprep.subr.mxu0 %v368
        %585 = vmatpush1.msra.mxu0 %v367
        %586 = vmatprep.subr.mxu0 %v372
        %587 = vmatpush1.msra.mxu0 %v371
        %588 = vmatprep.subr.mxu0 %v376
        %589 = vmatpush1.msra.mxu0 %v375
        %590 = vmatprep.subr.mxu0 %v380
        %591 = vmatpush1.msra.mxu0 %v379
        %592 = vmatprep.subr.mxu0 %v384
        %593 = vmatpush1.msra.mxu0 %v383
        %594 = vmatprep.subr.mxu0 %v388
        %595 = vmatpush1.msra.mxu0 %v387
        %596 = vmatprep.subr.mxu0 %v392
        %597 = vmatpush1.msra.mxu0 %v391
        %598 = vmatprep.subr.mxu0 %v396
        %599 = vmatpush1.msra.mxu0 %v395
        %600 = vmatprep.subr.mxu0 %v400
        %601 = vmatpush1.msra.mxu0 %v399
        %602 = vmatprep.subr.mxu0 %v404
        %603 = vmatpush1.msra.mxu0 %v403
        %604 = vmatprep.subr.mxu0 %v408
        %605 = vmatpush1.msra.mxu0 %v407
        %606 = vmatprep.subr.mxu0 %v412
        %607 = vmatpush1.msra.mxu0 %v411
        %608 = vmatprep.subr.mxu0 %v416
        %609 = vmatpush1.msra.mxu0 %v415
        %610 = vmatprep.subr.mxu0 %v420
        %611 = vmatpush1.msra.mxu0 %v419
        %612 = vmatprep.subr.mxu0 %v424
        %613 = vmatpush1.msra.mxu0 %v423
        %614 = vmatprep.subr.mxu0 %v428
        %615 = vmatpush1.msra.mxu0 %v427
        %616 = vmatprep.subr.mxu0 %v432
        %617 = vmatpush1.msra.mxu0 %v431
        %618 = vmatprep.subr.mxu0 %v436
        %619 = vmatpush1.msra.mxu0 %v435
        %620 = vmatprep.subr.mxu0 %v440
        %621 = vmatpush1.msra.mxu0 %v439
        %622 = vmatprep.subr.mxu0 %v444
        %623 = vmatpush1.msra.mxu0 %v443
        %624 = vmatprep.subr.mxu0 %v448
        %625 = vmatpush1.msra.mxu0 %v447
        %626 = vmatprep.subr.mxu0 %v452
        %627 = vmatpush1.msra.mxu0 %v451
        %628 = vmatprep.subr.mxu0 %v456
        %629 = vmatpush1.msra.mxu0 %v455
        %630 = vmatprep.subr.mxu0 %v460
        %631 = vmatpush1.msra.mxu0 %v459
        %632 = vmatprep.subr.mxu0 %v464
        %633 = vmatpush1.msra.mxu0 %v463
        %634 = vmatprep.subr.mxu0 %v468
        %635 = vmatpush1.msra.mxu0 %v467
        %636 = vmatprep.subr.mxu0 %v472
        %637 = vmatpush1.msra.mxu0 %v471
        %638 = vmatprep.subr.mxu0 %v476
        %639 = vmatpush1.msra.mxu0 %v475
        %640 = vmatprep.subr.mxu0 %v480
        %641 = vmatpush1.msra.mxu0 %v479
        %642 = vmatprep.subr.mxu0 %v484
        %643 = vmatpush1.msra.mxu0 %v483
        %644 = vmatprep.subr.mxu0 %v488
        %645 = vmatpush1.msra.mxu0 %v487
        %646 = vmatprep.mubr.f32.mxu0 %v272
        %647 = vmatmul.mubr.f32.gmra.mrb[0].mxu0 %v360
        %v648 = vpop.f32.mrb[0].mxu0
        %v649 = vadd.f32 %v502, %v648
        %v650 = vpop.f32.mrb[0].mxu0
        %v651 = vadd.f32 %v506, %v650
        %652 = vdwg.mxu0
        %v653 = vxor.u32 %v578, 2147483648
        %v654 = vmul.f32 %v653, 1.442695
        %v655 = vpow.pop %v654
        %v656 = vadd.f32 %v655, 1.0
        %v657 = vrcp.pop %v656
        %v658 = vmul.f32 1.0, %v657
        %v659 = vxor.u32 %v580, 2147483648
        %v660 = vmul.f32 %v659, 1.442695
        %v661 = vpow.pop %v660
        %v662 = vadd.f32 %v661, 1.0
        %v663 = vrcp.pop %v662
        %v664 = vmul.f32 1.0, %v663
        %v665 = vmul.f32 %v658, %v651
        %v666 = vadd.f32 %v649, %v665
        %v667 = vtanh.pop %v666
        %v668 = vsub.f32 1.0, %v664
        %v669 = vmul.f32 %v668, %v667
        %v670 = vmul.f32 %v664, %v272
        %v671 = vadd.f32 %v669, %v670
        %v672 = vld [vmem:[%s6] sm:$0xff]
        %v673 = vld [vmem:[%s6 + $0x8] sm:$0xff]
        %v674 = vld [vmem:[%s6 + $0x10] sm:$0xff]
        %v675 = vld [vmem:[%s6 + $0x18] sm:$0xff]
        %v676 = vld [vmem:[%s6 + $0x20] sm:$0xff]
        %v677 = vld [vmem:[%s6 + $0x28] sm:$0xff]
        %v678 = vld [vmem:[%s6 + $0x30] sm:$0xff]
        %v679 = vld [vmem:[%s6 + $0x38] sm:$0xff]
        %v680 = vld [vmem:[%s6 + $0x40] sm:$0xff]
        %v681 = vld [vmem:[%s6 + $0x48] sm:$0xff]
        %v682 = vld [vmem:[%s6 + $0x50] sm:$0xff]
        %v683 = vld [vmem:[%s6 + $0x58] sm:$0xff]
        %v684 = vld [vmem:[%s6 + $0x60] sm:$0xff]
        %v685 = vld [vmem:[%s6 + $0x68] sm:$0xff]
        %v686 = vld [vmem:[%s6 + $0x70] sm:$0xff]
        %v687 = vld [vmem:[%s6 + $0x78] sm:$0xff]
        %v688 = vld [vmem:[%s7] sm:$0x1]
        %689 = vmatprep.subr.mxu0 0.0
        %690 = vmatpush1.msra.mxu0 %v672
        %691 = vmatprep.subr.mxu0 0.0
        %692 = vmatpush1.msra.mxu0 %v673
        %693 = vmatprep.subr.mxu0 0.0
        %694 = vmatpush1.msra.mxu0 %v674
        %695 = vmatprep.subr.mxu0 0.0
        %696 = vmatpush1.msra.mxu0 %v675
        %697 = vmatprep.subr.mxu0 0.0
        %698 = vmatpush1.msra.mxu0 %v676
        %699 = vmatprep.subr.mxu0 0.0
        %700 = vmatpush1.msra.mxu0 %v677
        %701 = vmatprep.subr.mxu0 0.0
        %702 = vmatpush1.msra.mxu0 %v678
        %703 = vmatprep.subr.mxu0 0.0
        %704 = vmatpush1.msra.mxu0 %v679
        %705 = vmatprep.subr.mxu0 0.0
        %706 = vmatpush1.msra.mxu0 %v680
        %707 = vmatprep.subr.mxu0 0.0
        %708 = vmatpush1.msra.mxu0 %v681
        %709 = vmatprep.subr.mxu0 0.0
        %710 = vmatpush1.msra.mxu0 %v682
        %711 = vmatprep.subr.mxu0 0.0
        %712 = vmatpush1.msra.mxu0 %v683
        %713 = vmatprep.subr.mxu0 0.0
        %714 = vmatpush1.msra.mxu0 %v684
        %715 = vmatprep.subr.mxu0 0.0
        %716 = vmatpush1.msra.mxu0 %v685
        %717 = vmatprep.subr.mxu0 0.0
        %718 = vmatpush1.msra.mxu0 %v686
        %719 = vmatprep.subr.mxu0 0.0
        %720 = vmatpush1.msra.mxu0 %v687
        %721 = vmatprep.subr.mxu0 0.0
        %722 = vmatpush1.msra.mxu0 0.0
        %723 = vmatprep.subr.mxu0 0.0
        %724 = vmatpush1.msra.mxu0 0.0
        %725 = vmatprep.subr.mxu0 0.0
        %726 = vmatpush1.msra.mxu0 0.0
        %727 = vmatprep.subr.mxu0 0.0
        %728 = vmatpush1.msra.mxu0 0.0
        %729 = vmatprep.subr.mxu0 0.0
        %730 = vmatpush1.msra.mxu0 0.0
        %731 = vmatprep.subr.mxu0 0.0
        %732 = vmatpush1.msra.mxu0 0.0
        %733 = vmatprep.subr.mxu0 0.0
        %734 = vmatpush1.msra.mxu0 0.0
        %735 = vmatprep.subr.mxu0 0.0
        %736 = vmatpush1.msra.mxu0 0.0
        %737 = vmatprep.subr.mxu0 0.0
        %738 = vmatpush1.msra.mxu0 0.0
        %739 = vmatprep.subr.mxu0 0.0
        %740 = vmatpush1.msra.mxu0 0.0
        %741 = vmatprep.subr.mxu0 0.0
        %742 = vmatpush1.msra.mxu0 0.0
        %743 = vmatprep.subr.mxu0 0.0
        %744 = vmatpush1.msra.mxu0 0.0
        %745 = vmatprep.subr.mxu0 0.0
        %746 = vmatpush1.msra.mxu0 0.0
        %747 = vmatprep.subr.mxu0 0.0
        %748 = vmatpush1.msra.mxu0 0.0
        %749 = vmatprep.subr.mxu0 0.0
        %750 = vmatpush1.msra.mxu0 0.0
        %751 = vmatprep.subr.mxu0 0.0
        %752 = vmatpush1.msra.mxu0 0.0
        %753 = vmatprep.mubr.f32.mxu0 0.0
        %754 = vmatmul.mubr.f32.gmra.mrb[0].mxu0 %v671
        %v755 = vpop.f32.mrb[0].mxu0
        %v756 = vadd.f32 %v688, %v755
        %v757 = vpop.f32.mrb[0].mxu0
        %758 = vdwg.mxu0
        %vm759 = vcmp.lt.s32.totalorder %v257, 64
        %v760 = vsel %vm759, %v756, -1e+30
        %vm761 = vcmask 1040384
        %v762 = vsel %vm761, %v760, -inf
        %763 = vmax.xlane.f32.xlu0 %v762
        %v764 = vpop.xlane.xlu0 %763
        %v765 = vsub.f32 %v760, %v764
        %v766 = vmul.f32 %v765, 1.442695
        %v767 = vpow.pop %v766
        %v768 = vsel %vm761, %v767, 0.0
        %769 = vadd.xlane.f32.xlu0 %v768
        %v770 = vpop.xlane.xlu0 %769
        %v771 = vlog2.pop %v770
        %v772 = vmul.f32 %v771, 0.6931472
        %v773 = vsub.f32 %v765, %v772
        %775 = vset.pattern.permute.xlu0 0
        %776 = vperm.xlu0 %775, %v271
        %v777 = vpop.permute.xlu0 %776
        %v779 = vlaneseq
        %v780 = vshrl.u32 %v779, 7
        %v781 = vsub.s32 0, %v780
        %v782 = vrot.slane %v777, %v781
        %v783 = vmul.f32 %v773, %v782
        %784 = vst [vmem:[%s255] sm:$0x1] %v783
        %vm785 = vcmp.eq.f32.partialorder %v760, %v764
        %v786 = vsel %vm785, %v258, 128.0
        %v787 = vsel %vm761, %v786, inf
        %788 = vmin.xlane.f32.xlu0 %v787
        %v789 = vpop.xlane.xlu0 %788
        %vm790 = vcmp.eq.f32.partialorder %v258, %v789
        %v791 = vsel %vm790, 1, 0
        %v792 = vcvt.s32.f32 %v791
        %s793 = smul.u32 %s33, 128
        %s794 = sld [smem:[#allocation6 + %s793]]
        %v795 = vstv %s794
        %vm796 = vcmp.eq.s32.totalorder %v257, %v795
        %v797 = vsel %vm796, 1, 0
        %v798 = vcvt.s32.f32 %v797
        %s799 = sld [smem:[#allocation7 + %s33]]
        %s800 = scvt.s32.f32 %s799
        %v801 = vstv %s800
        %v802 = vmul.f32 %v801, %v798
        %s803 = ssub.f32 1.0, %s800
        %v804 = vstv %s803
        %v805 = vmul.f32 %v804, %v792
        %v806 = vadd.f32 %v802, %v805
        %vm807 = vcmp.eq.s32.totalorder %v257, 1
        %v808 = vsel %vm807, 1, 0
        %v809 = vcvt.s32.f32 %v808
        %v810 = vmul.f32 %v792, %v809
        %v811 = vsel %vm761, %v810, 0.0
        %812 = vadd.xlane.f32.xlu0 %v811
        %v813 = vpop.xlane.xlu0 %812
        %v814 = vmul.f32 %v804, %v813
        %v815 = vsub.f32 1.0, %v814
        %v816 = vmul.f32 %v271, %v815
        %vm817 = vcmask 0
        %818 = vst.msk [vmem:[#allocation4] sm:$0x1] %vm817, %v816
        %v819 = vmul.f32 %v782, %v671
        %v820 = vsub.f32 1.0, %v271
        %822 = vset.pattern.permute.xlu0 0
        %823 = vperm.xlu0 %822, %v820
        %v824 = vpop.permute.xlu0 %823
        %v826 = vlaneseq
        %v827 = vshrl.u32 %v826, 7
        %v828 = vsub.s32 0, %v827
        %v829 = vrot.slane %v824, %v828
        %v830 = vmul.f32 %v829, %v272
        %v831 = vadd.f32 %v819, %v830
        %832 = vst [vmem:[#allocation2] sm:$0x1] %v831
        %v833 = vmul.f32 %v782, %v806
        %v834 = vld [vmem:[#allocation3] sm:$0x1]
        %v835 = vmul.f32 %v829, %v834
        %v836 = vadd.f32 %v833, %v835
        %837 = vst [vmem:[#allocation3] sm:$0x1] %v836
        %s838 = sand.u32 %s167, 1
        %s839 = scalar_lea.sflag [#allocation10], %s838
        %s840 = sand.u32 %s167, 1
        %s841 = scalar_lea.vmem [#allocation11], %s840
        // Predicated region
        $region53: #{_forward_impl.3} parent=43 // pred_check
          %p842 = pneg %p177
        $region54: #{_forward_impl.3} parent=43 // pred_check_branch
          %844 = sbr.rel (%p842) target = $region56
        $region55: #{_forward_impl.3} parent=43 // pred_region
          %s846 = ssub.s32 16, 16
          %847 = vsyncadd %s839, %s846
          %s848 = smul.addr %s33, 16
          %s849 = scalar_lea.hbm %s8, %s848
          %s851 = sshll.u32 %s841, 4
          %s852 = int_to_ptr.vmem [resolvable:$true] %s851
          %854 = dma.vmem_to_hbm [thread:$0]  %s852, 16, %s849, %s839
        $region56: #{_forward_impl.3} parent=43 // pred_fallthru
          _
      $region44: #{_forward_impl.3} parent=5 // pred_fallthru
        _
      %p855 = scmp.le.s32.totalorder 2, %s28
      // Predicated region
      $region57: #{_forward_impl.3} parent=5 // pred_check
        %p856 = pneg %p855
      $region58: #{_forward_impl.3} parent=5 // pred_check_branch
        %858 = sbr.rel (%p856) target = $region60
      $region59: #{_forward_impl.3} parent=5 // pred_region
        %s859 = ssub.s32 %s28, 2
        // Predicated region
        $region61: #{_forward_impl.3} parent=59 // pred_check
          %p860 = pneg %p183
        $region62: #{_forward_impl.3} parent=59 // pred_check_branch
          %862 = sbr.rel (%p860) target = $region64
        $region63: #{_forward_impl.3} parent=59 // pred_region
          %s863 = sand.u32 %s168, 1
          %s864 = scalar_lea.sflag [#allocation10], %s863
          %s865 = sand.u32 %s168, 1
          %s866 = scalar_lea.vmem [#allocation11], %s865
          %867 = dma.done %s864, 16
        $region64: #{_forward_impl.3} parent=59 // pred_fallthru
          _
      $region60: #{_forward_impl.3} parent=5 // pred_fallthru
        _
    $region6: #{_forward_impl.3} parent=1 // loop_footer
      %s32 = sadd.s32 1, %s28
    $region7: #{_forward_impl.3} parent=1 // loop_footer_branch
      %27 = sbr.rel target = $region3
    $region8: #{_forward_impl.3} parent=1 // loop_exit
      _
    %868 = vsyncpa [#allocation9], 1
    %s869 = scalar_lea.sflag [#allocation9], 1
    %870 = vsyncpa %s869, 1
    %871 = vsyncpa [#allocation10], 1
    %s872 = scalar_lea.sflag [#allocation10], 1
    %873 = vsyncpa %s872, 1

// kernel: _forward_impl.2
$region0: #{_forward_impl.2}
  #allocation0 [shape = 'u32[]', space=smem, size = 0x4, offset = 0x4, fixed_abs, tag = 'smem constant byte address 0x4 - core index']
  #allocation1 [shape = 'u32[144,128]{1,0:T(1,128)}', space=vmem, size = 0x12000, scoped, tag = 'internal scratch']
  #allocation2 [shape = 's32[1]{0}', space=sflag, size = 0x4, scoped, tag = 'scoped memory for _forward_impl.2']
  #allocation3 [shape = 'u8[4096]{0}', space=smem, size = 0x1000, scoped, tag = 'prefetched SMEM operand 0']
  %s0 = inlined_call_operand.vmem [shape: s32[8,1], index: 0, kind: input, shape index: {}]
  %s1 = inlined_call_operand.hbm [shape: f32[128,128], index: 1, kind: input, shape index: {}]
  %s2 = inlined_call_operand.hbm [shape: f32[256,512], index: 2, kind: input, shape index: {}]
  %s3 = inlined_call_operand.vmem [shape: f32[1,512], index: 3, kind: input, shape index: {}]
  %s4 = inlined_call_operand.vmem [shape: f32[1,128], index: 4, kind: output, shape index: {}]
  %s5 = sld [smem:[#allocation0]]
  $region57: #{_forward_impl.2} parent=0
    _
  %s7 = ssub.s32 1, %s5
  %s8 = scalar_select 0, %s7, %s5
  %s9 = sshll.u32 %s0, 4
  %s10 = int_to_ptr.vmem [resolvable:$true] %s9
  %12 = dma.vmem_to_smem %s10, 128, [#allocation3], [#allocation2]
  %13 = dma.done [#allocation2], 128
  %14 = sfence
  $region1: #{_forward_impl.2} parent=0
    #allocation4 [shape = 'u8[65536]{0}', space=vmem, size = 0x10000, scoped, tag = 'input window, operand 1, single buffered']
    #allocation5 [shape = 's32[2]{0}', space=sflag, size = 0x8, scoped, tag = 'scoped memory for _forward_impl.2']
    #allocation6 [shape = 'u8[524288]{0}', space=vmem, size = 0x80000, scoped, tag = 'input window, operand 2, single buffered']
    #allocation7 [shape = 's32[1]{0}', space=sflag, size = 0x4, scoped, tag = 'scoped memory for _forward_impl.2']
    %15 = vsyncpa [#allocation5], 0
    %16 = vsyncpa [#allocation7], 0
    loop: start=0, step=1, limit=10
    $region2: #{_forward_impl.2} parent=1 // loop_pre_header
      _
    $region3: #{_forward_impl.2} parent=1 // loop_header
      %s18 = sphi 0, %s22
      %p19 = scmp.ge.s32.totalorder %s18, 10
      %s26 = sphi 0, %s26
      %s28 = sphi 0, %s26
      %s29 = sphi 0, %s28
      %s43 = sphi 0, %s29
      %s47 = sphi 0, %s47
      %s49 = sphi 0, %s47
      %s50 = sphi 0, %s49
      %s64 = sphi 0, %s50
      %s68 = sphi 0, %s68
      %s70 = sphi 0, %s68
      %s71 = sphi 0, %s70
      %s85 = sphi 0, %s71
      %s89 = sphi 0, %s89
      %s91 = sphi 0, %s89
      %s92 = sphi 0, %s91
      %s106 = sphi 0, %s92
    $region4: #{_forward_impl.2} parent=1 // loop_header_branch
      %21 = sbr.rel (%p19) target = $region8
    $region5: #{_forward_impl.2} parent=1 // loop_body
      %s23 = ssub.s32 %s18, 1
      %s24 = ssub.s32 %s18, 2
      %s25 = sadd.s32 %s18, 1
      %s27 = sadd.s32 %s26, 1
      %p30 = scmp.eq.s32.totalorder %s18, 7
      %p31 = scmp.ne.s32.totalorder %s26, %s28
      %p32 = scmp.eq.s32.totalorder %s18, 0
      %p33 = por %p31, %p32
      %p34 = scmp.ne.s32.totalorder %s26, %s28
      %p35 = scmp.eq.s32.totalorder %s23, 7
      %p36 = por %p34, %p35
      %p37 = scmp.ne.s32.totalorder %s28, %s29
      %p38 = scmp.eq.s32.totalorder %s23, 0
      %p39 = por %p37, %p38
      %p40 = scmp.ne.s32.totalorder %s28, %s29
      %p41 = scmp.eq.s32.totalorder %s24, 7
      %p42 = por %p40, %p41
      %p44 = scmp.ne.s32.totalorder %s29, %s43
      %p45 = scmp.eq.s32.totalorder %s24, 0
      %p46 = por %p44, %p45
      %s48 = sadd.s32 %s47, 1
      %p51 = scmp.eq.s32.totalorder %s18, 7
      %p52 = scmp.ne.s32.totalorder %s47, %s49
      %p53 = scmp.eq.s32.totalorder %s18, 0
      %p54 = por %p52, %p53
      %p55 = scmp.ne.s32.totalorder %s47, %s49
      %p56 = scmp.eq.s32.totalorder %s23, 7
      %p57 = por %p55, %p56
      %p58 = scmp.ne.s32.totalorder %s49, %s50
      %p59 = scmp.eq.s32.totalorder %s23, 0
      %p60 = por %p58, %p59
      %p61 = scmp.ne.s32.totalorder %s49, %s50
      %p62 = scmp.eq.s32.totalorder %s24, 7
      %p63 = por %p61, %p62
      %p65 = scmp.ne.s32.totalorder %s50, %s64
      %p66 = scmp.eq.s32.totalorder %s24, 0
      %p67 = por %p65, %p66
      %s69 = sadd.s32 %s68, 1
      %p72 = scmp.eq.s32.totalorder %s18, 7
      %p73 = scmp.ne.s32.totalorder %s68, %s70
      %p74 = scmp.eq.s32.totalorder %s18, 0
      %p75 = por %p73, %p74
      %p76 = scmp.ne.s32.totalorder %s68, %s70
      %p77 = scmp.eq.s32.totalorder %s23, 7
      %p78 = por %p76, %p77
      %p79 = scmp.ne.s32.totalorder %s70, %s71
      %p80 = scmp.eq.s32.totalorder %s23, 0
      %p81 = por %p79, %p80
      %p82 = scmp.ne.s32.totalorder %s70, %s71
      %p83 = scmp.eq.s32.totalorder %s24, 7
      %p84 = por %p82, %p83
      %p86 = scmp.ne.s32.totalorder %s71, %s85
      %p87 = scmp.eq.s32.totalorder %s24, 0
      %p88 = por %p86, %p87
      %s90 = sadd.s32 %s89, 1
      %p93 = scmp.eq.s32.totalorder %s18, 7
      %p94 = scmp.ne.s32.totalorder %s89, %s91
      %p95 = scmp.eq.s32.totalorder %s18, 0
      %p96 = por %p94, %p95
      %p97 = scmp.ne.s32.totalorder %s89, %s91
      %p98 = scmp.eq.s32.totalorder %s23, 7
      %p99 = por %p97, %p98
      %p100 = scmp.ne.s32.totalorder %s91, %s92
      %p101 = scmp.eq.s32.totalorder %s23, 0
      %p102 = por %p100, %p101
      %p103 = scmp.ne.s32.totalorder %s91, %s92
      %p104 = scmp.eq.s32.totalorder %s24, 7
      %p105 = por %p103, %p104
      %p107 = scmp.ne.s32.totalorder %s92, %s106
      %p108 = scmp.eq.s32.totalorder %s24, 0
      %p109 = por %p107, %p108
      %p110 = scmp.le.s32.totalorder 1, %s18
      %p111 = scmp.lt.s32.totalorder %s18, 9
      %p112 = pnand %p110, %p111
      %p113 = pneg %p112
      // Predicated region
      $region9: #{_forward_impl.2} parent=5 // pred_check
        _
      $region10: #{_forward_impl.2} parent=5 // pred_check_branch
        %115 = sbr.rel (%p112) target = $region12
      $region11: #{_forward_impl.2} parent=5 // pred_region
        %s116 = ssub.s32 %s18, 1
        // Predicated region
        $region13: #{_forward_impl.2} parent=11 // pred_check
          %p117 = pneg %p39
        $region14: #{_forward_impl.2} parent=11 // pred_check_branch
          %119 = sbr.rel (%p117) target = $region16
        $region15: #{_forward_impl.2} parent=11 // pred_region
          %s121 = ssub.s32 2048, 2048
          %122 = vsyncadd [#allocation5], %s121
          %s123 = sshll.u32 [#allocation4], 4
          %s124 = int_to_ptr.vmem [resolvable:$true] %s123
          %129 = dma.hbm_to_vmem [thread:$0]  %s1, 2048, %s124, [#allocation5], 128, 128, 8
        $region16: #{_forward_impl.2} parent=11 // pred_fallthru
          _
        // Predicated region
        $region17: #{_forward_impl.2} parent=11 // pred_check
          %p130 = pneg %p60
        $region18: #{_forward_impl.2} parent=11 // pred_check_branch
          %132 = sbr.rel (%p130) target = $region20
        $region19: #{_forward_impl.2} parent=11 // pred_region
          %s134 = ssub.s32 16384, 16384
          %135 = vsyncadd [#allocation7], %s134
          %s136 = sshll.u32 [#allocation6], 4
          %s137 = int_to_ptr.vmem [resolvable:$true] %s136
          %142 = dma.hbm_to_vmem [thread:$0]  %s2, 16384, %s137, [#allocation7], 512, 512, 32
        $region20: #{_forward_impl.2} parent=11 // pred_fallthru
          _
        // Predicated region
        $region21: #{_forward_impl.2} parent=11 // pred_check
          %p143 = pneg %p81
        $region22: #{_forward_impl.2} parent=11 // pred_check_branch
          %145 = sbr.rel (%p143) target = $region24
        $region23: #{_forward_impl.2} parent=11 // pred_region
          _
        $region24: #{_forward_impl.2} parent=11 // pred_fallthru
          _
      $region12: #{_forward_impl.2} parent=5 // pred_fallthru
        _
      %p146 = scmp.lt.s32.totalorder %s18, 8
      // Predicated region
      $region25: #{_forward_impl.2} parent=5 // pred_check
        %p147 = pneg %p146
      $region26: #{_forward_impl.2} parent=5 // pred_check_branch
        %149 = sbr.rel (%p147) target = $region28
      $region27: #{_forward_impl.2} parent=5 // pred_region
        _
      $region28: #{_forward_impl.2} parent=5 // pred_fallthru
        _
      %p150 = scmp.le.s32.totalorder 1, %s18
      %p151 = scmp.lt.s32.totalorder %s18, 9
      %p152 = pnand %p150, %p151
      %p153 = pneg %p152
      // Predicated region
      $region29: #{_forward_impl.2} parent=5 // pred_check
        _
      $region30: #{_forward_impl.2} parent=5 // pred_check_branch
        %155 = sbr.rel (%p152) target = $region32
      $region31: #{_forward_impl.2} parent=5 // pred_region
        %s156 = ssub.s32 %s18, 1
        // Predicated region
        $region33: #{_forward_impl.2} parent=31 // pred_check
          %p157 = pneg %p39
        $region34: #{_forward_impl.2} parent=31 // pred_check_branch
          %159 = sbr.rel (%p157) target = $region36
        $region35: #{_forward_impl.2} parent=31 // pred_region
          %160 = dma.done [#allocation5], 2048
        $region36: #{_forward_impl.2} parent=31 // pred_fallthru
          _
        // Predicated region
        $region37: #{_forward_impl.2} parent=31 // pred_check
          %p161 = pneg %p60
        $region38: #{_forward_impl.2} parent=31 // pred_check_branch
          %163 = sbr.rel (%p161) target = $region40
        $region39: #{_forward_impl.2} parent=31 // pred_region
          %164 = dma.done [#allocation7], 16384
        $region40: #{_forward_impl.2} parent=31 // pred_fallthru
          _
        %p165 = pneg %p39
        %p166 = pneg %p36
        %p167 = pneg %p60
        %p168 = pneg %p57
        %p169 = pneg %p81
        %p170 = pneg %p78
        %p171 = pneg %p102
        %p172 = pneg %p99
        %p173 = scmp.eq.s32.totalorder %s23, 0
        // Predicated region
        $region41: #{_forward_impl.2} parent=31 // pred_check
          %p174 = pneg %p173
        $region42: #{_forward_impl.2} parent=31 // pred_check_branch
          %176 = sbr.rel (%p174) target = $region44
        $region43: #{_forward_impl.2} parent=31 // pred_region
          %177 = vst [vmem:[%s4] sm:$0x1] 0.0
        $region44: #{_forward_impl.2} parent=31 // pred_fallthru
          _
        %v178 = vlaneseq
        %v179 = vand.u32 %v178, 127
        %s180 = smul.u32 %s23, 128
        %s181 = sld [smem:[#allocation3 + %s180]]
        %v182 = vstv %s181
        %vm183 = vcmp.eq.s32.totalorder %v179, %v182
        %v184 = vsel %vm183, 1, 0
        %v185 = vcvt.s32.f32 %v184
        %v186 = vld [vmem:[#allocation4] sm:$0xff]
        %v187 = vld [vmem:[#allocation4 + $0x8] sm:$0xff]
        %v188 = vld [vmem:[#allocation4 + $0x10] sm:$0xff]
        %v189 = vld [vmem:[#allocation4 + $0x18] sm:$0xff]
        %v190 = vld [vmem:[#allocation4 + $0x20] sm:$0xff]
        %v191 = vld [vmem:[#allocation4 + $0x28] sm:$0xff]
        %v192 = vld [vmem:[#allocation4 + $0x30] sm:$0xff]
        %v193 = vld [vmem:[#allocation4 + $0x38] sm:$0xff]
        %v194 = vld [vmem:[#allocation4 + $0x40] sm:$0xff]
        %v195 = vld [vmem:[#allocation4 + $0x48] sm:$0xff]
        %v196 = vld [vmem:[#allocation4 + $0x50] sm:$0xff]
        %v197 = vld [vmem:[#allocation4 + $0x58] sm:$0xff]
        %v198 = vld [vmem:[#allocation4 + $0x60] sm:$0xff]
        %v199 = vld [vmem:[#allocation4 + $0x68] sm:$0xff]
        %v200 = vld [vmem:[#allocation4 + $0x70] sm:$0xff]
        %v201 = vld [vmem:[#allocation4 + $0x78] sm:$0xff]
        %202 = vmatprep.subr.mxu0 0.0
        %203 = vmatpush1.msra.mxu0 %v186
        %204 = vmatprep.subr.mxu0 0.0
        %205 = vmatpush1.msra.mxu0 %v187
        %206 = vmatprep.subr.mxu0 0.0
        %207 = vmatpush1.msra.mxu0 %v188
        %208 = vmatprep.subr.mxu0 0.0
        %209 = vmatpush1.msra.mxu0 %v189
        %210 = vmatprep.subr.mxu0 0.0
        %211 = vmatpush1.msra.mxu0 %v190
        %212 = vmatprep.subr.mxu0 0.0
        %213 = vmatpush1.msra.mxu0 %v191
        %214 = vmatprep.subr.mxu0 0.0
        %215 = vmatpush1.msra.mxu0 %v192
        %216 = vmatprep.subr.mxu0 0.0
        %217 = vmatpush1.msra.mxu0 %v193
        %218 = vmatprep.subr.mxu0 0.0
        %219 = vmatpush1.msra.mxu0 %v194
        %220 = vmatprep.subr.mxu0 0.0
        %221 = vmatpush1.msra.mxu0 %v195
        %222 = vmatprep.subr.mxu0 0.0
        %223 = vmatpush1.msra.mxu0 %v196
        %224 = vmatprep.subr.mxu0 0.0
        %225 = vmatpush1.msra.mxu0 %v197
        %226 = vmatprep.subr.mxu0 0.0
        %227 = vmatpush1.msra.mxu0 %v198
        %228 = vmatprep.subr.mxu0 0.0
        %229 = vmatpush1.msra.mxu0 %v199
        %230 = vmatprep.subr.mxu0 0.0
        %231 = vmatpush1.msra.mxu0 %v200
        %232 = vmatprep.subr.mxu0 0.0
        %233 = vmatpush1.msra.mxu0 %v201
        %234 = vmatprep.subr.mxu0 0.0
        %235 = vmatpush1.msra.mxu0 0.0
        %236 = vmatprep.subr.mxu0 0.0
        %237 = vmatpush1.msra.mxu0 0.0
        %238 = vmatprep.subr.mxu0 0.0
        %239 = vmatpush1.msra.mxu0 0.0
        %240 = vmatprep.subr.mxu0 0.0
        %241 = vmatpush1.msra.mxu0 0.0
        %242 = vmatprep.subr.mxu0 0.0
        %243 = vmatpush1.msra.mxu0 0.0
        %244 = vmatprep.subr.mxu0 0.0
        %245 = vmatpush1.msra.mxu0 0.0
        %246 = vmatprep.subr.mxu0 0.0
        %247 = vmatpush1.msra.mxu0 0.0
        %248 = vmatprep.subr.mxu0 0.0
        %249 = vmatpush1.msra.mxu0 0.0
        %250 = vmatprep.subr.mxu0 0.0
        %251 = vmatpush1.msra.mxu0 0.0
        %252 = vmatprep.subr.mxu0 0.0
        %253 = vmatpush1.msra.mxu0 0.0
        %254 = vmatprep.subr.mxu0 0.0
        %255 = vmatpush1.msra.mxu0 0.0
        %256 = vmatprep.subr.mxu0 0.0
        %257 = vmatpush1.msra.mxu0 0.0
        %258 = vmatprep.subr.mxu0 0.0
        %259 = vmatpush1.msra.mxu0 0.0
        %260 = vmatprep.subr.mxu0 0.0
        %261 = vmatpush1.msra.mxu0 0.0
        %262 = vmatprep.subr.mxu0 0.0
        %263 = vmatpush1.msra.mxu0 0.0
        %264 = vmatprep.subr.mxu0 0.0
        %265 = vmatpush1.msra.mxu0 0.0
        %266 = vmatprep.mubr.f32.mxu0 0.0
        %267 = vmatmul.mubr.f32.gmra.mrb[0].mxu0 %v185
        %v268 = vpop.f32.mrb[0].mxu0
        %v269 = vadd.f32 0.0, %v268
        %v270 = vpop.f32.mrb[0].mxu0
        %271 = vdwg.mxu0
        %v272 = vld [vmem:[%s4] sm:$0x1]
        %v273 = vld [vmem:[#allocation6] sm:$0xff]
        %v274 = vld [vmem:[#allocation6 + $0x8] sm:$0xff]
        %v275 = vld [vmem:[#allocation6 + $0x10] sm:$0xff]
        %v276 = vld [vmem:[#allocation6 + $0x18] sm:$0xff]
        %v277 = vld [vmem:[#allocation6 + $0x20] sm:$0xff]
        %v278 = vld [vmem:[#allocation6 + $0x28] sm:$0xff]
        %v279 = vld [vmem:[#allocation6 + $0x30] sm:$0xff]
        %v280 = vld [vmem:[#allocation6 + $0x38] sm:$0xff]
        %v281 = vld [vmem:[#allocation6 + $0x40] sm:$0xff]
        %v282 = vld [vmem:[#allocation6 + $0x48] sm:$0xff]
        %v283 = vld [vmem:[#allocation6 + $0x50] sm:$0xff]
        %v284 = vld [vmem:[#allocation6 + $0x58] sm:$0xff]
        %v285 = vld [vmem:[#allocation6 + $0x60] sm:$0xff]
        %v286 = vld [vmem:[#allocation6 + $0x68] sm:$0xff]
        %v287 = vld [vmem:[#allocation6 + $0x70] sm:$0xff]
        %v288 = vld [vmem:[#allocation6 + $0x78] sm:$0xff]
        %v289 = vld [vmem:[#allocation6 + $0x80] sm:$0xff]
        %v290 = vld [vmem:[#allocation6 + $0x88] sm:$0xff]
        %v291 = vld [vmem:[#allocation6 + $0x90] sm:$0xff]
        %v292 = vld [vmem:[#allocation6 + $0x98] sm:$0xff]
        %v293 = vld [vmem:[#allocation6 + $0xa0] sm:$0xff]
        %v294 = vld [vmem:[#allocation6 + $0xa8] sm:$0xff]
        %v295 = vld [vmem:[#allocation6 + $0xb0] sm:$0xff]
        %v296 = vld [vmem:[#allocation6 + $0xb8] sm:$0xff]
        %v297 = vld [vmem:[#allocation6 + $0xc0] sm:$0xff]
        %v298 = vld [vmem:[#allocation6 + $0xc8] sm:$0xff]
        %v299 = vld [vmem:[#allocation6 + $0xd0] sm:$0xff]
        %v300 = vld [vmem:[#allocation6 + $0xd8] sm:$0xff]
        %v301 = vld [vmem:[#allocation6 + $0xe0] sm:$0xff]
        %v302 = vld [vmem:[#allocation6 + $0xe8] sm:$0xff]
        %v303 = vld [vmem:[#allocation6 + $0xf0] sm:$0xff]
        %v304 = vld [vmem:[#allocation6 + $0xf8] sm:$0xff]
        %v305 = vld [vmem:[#allocation6 + $0x100] sm:$0xff]
        %v306 = vld [vmem:[#allocation6 + $0x108] sm:$0xff]
        %v307 = vld [vmem:[#allocation6 + $0x110] sm:$0xff]
        %v308 = vld [vmem:[#allocation6 + $0x118] sm:$0xff]
        %v309 = vld [vmem:[#allocation6 + $0x120] sm:$0xff]
        %v310 = vld [vmem:[#allocation6 + $0x128] sm:$0xff]
        %v311 = vld [vmem:[#allocation6 + $0x130] sm:$0xff]
        %v312 = vld [vmem:[#allocation6 + $0x138] sm:$0xff]
        %v313 = vld [vmem:[#allocation6 + $0x140] sm:$0xff]
        %v314 = vld [vmem:[#allocation6 + $0x148] sm:$0xff]
        %v315 = vld [vmem:[#allocation6 + $0x150] sm:$0xff]
        %v316 = vld [vmem:[#allocation6 + $0x158] sm:$0xff]
        %v317 = vld [vmem:[#allocation6 + $0x160] sm:$0xff]
        %v318 = vld [vmem:[#allocation6 + $0x168] sm:$0xff]
        %v319 = vld [vmem:[#allocation6 + $0x170] sm:$0xff]
        %v320 = vld [vmem:[#allocation6 + $0x178] sm:$0xff]
        %v321 = vld [vmem:[#allocation6 + $0x180] sm:$0xff]
        %v322 = vld [vmem:[#allocation6 + $0x188] sm:$0xff]
        %v323 = vld [vmem:[#allocation6 + $0x190] sm:$0xff]
        %v324 = vld [vmem:[#allocation6 + $0x198] sm:$0xff]
        %v325 = vld [vmem:[#allocation6 + $0x1a0] sm:$0xff]
        %v326 = vld [vmem:[#allocation6 + $0x1a8] sm:$0xff]
        %v327 = vld [vmem:[#allocation6 + $0x1b0] sm:$0xff]
        %v328 = vld [vmem:[#allocation6 + $0x1b8] sm:$0xff]
        %v329 = vld [vmem:[#allocation6 + $0x1c0] sm:$0xff]
        %v330 = vld [vmem:[#allocation6 + $0x1c8] sm:$0xff]
        %v331 = vld [vmem:[#allocation6 + $0x1d0] sm:$0xff]
        %v332 = vld [vmem:[#allocation6 + $0x1d8] sm:$0xff]
        %v333 = vld [vmem:[#allocation6 + $0x1e0] sm:$0xff]
        %v334 = vld [vmem:[#allocation6 + $0x1e8] sm:$0xff]
        %v335 = vld [vmem:[#allocation6 + $0x1f0] sm:$0xff]
        %v336 = vld [vmem:[#allocation6 + $0x1f8] sm:$0xff]
        %v337 = vld [vmem:[#allocation6 + $0x200] sm:$0xff]
        %v338 = vld [vmem:[#allocation6 + $0x208] sm:$0xff]
        %v339 = vld [vmem:[#allocation6 + $0x210] sm:$0xff]
        %v340 = vld [vmem:[#allocation6 + $0x218] sm:$0xff]
        %v341 = vld [vmem:[#allocation6 + $0x220] sm:$0xff]
        %v342 = vld [vmem:[#allocation6 + $0x228] sm:$0xff]
        %v343 = vld [vmem:[#allocation6 + $0x230] sm:$0xff]
        %v344 = vld [vmem:[#allocation6 + $0x238] sm:$0xff]
        %v345 = vld [vmem:[#allocation6 + $0x240] sm:$0xff]
        %v346 = vld [vmem:[#allocation6 + $0x248] sm:$0xff]
        %v347 = vld [vmem:[#allocation6 + $0x250] sm:$0xff]
        %v348 = vld [vmem:[#allocation6 + $0x258] sm:$0xff]
        %v349 = vld [vmem:[#allocation6 + $0x260] sm:$0xff]
        %v350 = vld [vmem:[#allocation6 + $0x268] sm:$0xff]
        %v351 = vld [vmem:[#allocation6 + $0x270] sm:$0xff]
        %v352 = vld [vmem:[#allocation6 + $0x278] sm:$0xff]
        %v353 = vld [vmem:[#allocation6 + $0x280] sm:$0xff]
        %v354 = vld [vmem:[#allocation6 + $0x288] sm:$0xff]
        %v355 = vld [vmem:[#allocation6 + $0x290] sm:$0xff]
        %v356 = vld [vmem:[#allocation6 + $0x298] sm:$0xff]
        %v357 = vld [vmem:[#allocation6 + $0x2a0] sm:$0xff]
        %v358 = vld [vmem:[#allocation6 + $0x2a8] sm:$0xff]
        %v359 = vld [vmem:[#allocation6 + $0x2b0] sm:$0xff]
        %v360 = vld [vmem:[#allocation6 + $0x2b8] sm:$0xff]
        %v361 = vld [vmem:[#allocation6 + $0x2c0] sm:$0xff]
        %v362 = vld [vmem:[#allocation6 + $0x2c8] sm:$0xff]
        %v363 = vld [vmem:[#allocation6 + $0x2d0] sm:$0xff]
        %v364 = vld [vmem:[#allocation6 + $0x2d8] sm:$0xff]
        %v365 = vld [vmem:[#allocation6 + $0x2e0] sm:$0xff]
        %v366 = vld [vmem:[#allocation6 + $0x2e8] sm:$0xff]
        %v367 = vld [vmem:[#allocation6 + $0x2f0] sm:$0xff]
        %v368 = vld [vmem:[#allocation6 + $0x2f8] sm:$0xff]
        %v369 = vld [vmem:[#allocation6 + $0x300] sm:$0xff]
        %v370 = vld [vmem:[#allocation6 + $0x308] sm:$0xff]
        %v371 = vld [vmem:[#allocation6 + $0x310] sm:$0xff]
        %v372 = vld [vmem:[#allocation6 + $0x318] sm:$0xff]
        %v373 = vld [vmem:[#allocation6 + $0x320] sm:$0xff]
        %v374 = vld [vmem:[#allocation6 + $0x328] sm:$0xff]
        %v375 = vld [vmem:[#allocation6 + $0x330] sm:$0xff]
        %v376 = vld [vmem:[#allocation6 + $0x338] sm:$0xff]
        %v377 = vld [vmem:[#allocation6 + $0x340] sm:$0xff]
        %v378 = vld [vmem:[#allocation6 + $0x348] sm:$0xff]
        %v379 = vld [vmem:[#allocation6 + $0x350] sm:$0xff]
        %v380 = vld [vmem:[#allocation6 + $0x358] sm:$0xff]
        %v381 = vld [vmem:[#allocation6 + $0x360] sm:$0xff]
        %v382 = vld [vmem:[#allocation6 + $0x368] sm:$0xff]
        %v383 = vld [vmem:[#allocation6 + $0x370] sm:$0xff]
        %v384 = vld [vmem:[#allocation6 + $0x378] sm:$0xff]
        %v385 = vld [vmem:[#allocation6 + $0x380] sm:$0xff]
        %v386 = vld [vmem:[#allocation6 + $0x388] sm:$0xff]
        %v387 = vld [vmem:[#allocation6 + $0x390] sm:$0xff]
        %v388 = vld [vmem:[#allocation6 + $0x398] sm:$0xff]
        %v389 = vld [vmem:[#allocation6 + $0x3a0] sm:$0xff]
        %v390 = vld [vmem:[#allocation6 + $0x3a8] sm:$0xff]
        %v391 = vld [vmem:[#allocation6 + $0x3b0] sm:$0xff]
        %v392 = vld [vmem:[#allocation6 + $0x3b8] sm:$0xff]
        %v393 = vld [vmem:[#allocation6 + $0x3c0] sm:$0xff]
        %v394 = vld [vmem:[#allocation6 + $0x3c8] sm:$0xff]
        %v395 = vld [vmem:[#allocation6 + $0x3d0] sm:$0xff]
        %v396 = vld [vmem:[#allocation6 + $0x3d8] sm:$0xff]
        %v397 = vld [vmem:[#allocation6 + $0x3e0] sm:$0xff]
        %v398 = vld [vmem:[#allocation6 + $0x3e8] sm:$0xff]
        %v399 = vld [vmem:[#allocation6 + $0x3f0] sm:$0xff]
        %v400 = vld [vmem:[#allocation6 + $0x3f8] sm:$0xff]
        %v401 = vld [vmem:[%s3] sm:$0xf]
        %v403 = vlaneseq
        %v404 = vshrl.u32 %v403, 7
        %v405 = vsub.s32 0, %v404
        %v406 = vrot.slane %v401, %v405
        %v407 = vlaneseq
        %v408 = vshrl.u32 %v407, 7
        %v409 = vsub.s32 1, %v408
        %v410 = vrot.slane %v401, %v409
        %v411 = vlaneseq
        %v412 = vshrl.u32 %v411, 7
        %v413 = vsub.s32 2, %v412
        %v414 = vrot.slane %v401, %v413
        %v415 = vlaneseq
        %v416 = vshrl.u32 %v415, 7
        %v417 = vsub.s32 3, %v416
        %v418 = vrot.slane %v401, %v417
        %423 = vmatprep.subr.mxu0 %v274
        %424 = vmatpush1.msra.mxu0 %v273
        %425 = vmatprep.subr.mxu0 %v278
        %426 = vmatpush1.msra.mxu0 %v277
        %427 = vmatprep.subr.mxu0 %v282
        %428 = vmatpush1.msra.mxu0 %v281
        %429 = vmatprep.subr.mxu0 %v286
        %430 = vmatpush1.msra.mxu0 %v285
        %431 = vmatprep.subr.mxu0 %v290
        %432 = vmatpush1.msra.mxu0 %v289
        %433 = vmatprep.subr.mxu0 %v294
        %434 = vmatpush1.msra.mxu0 %v293
        %435 = vmatprep.subr.mxu0 %v298
        %436 = vmatpush1.msra.mxu0 %v297
        %437 = vmatprep.subr.mxu0 %v302
        %438 = vmatpush1.msra.mxu0 %v301
        %439 = vmatprep.subr.mxu0 %v306
        %440 = vmatpush1.msra.mxu0 %v305
        %441 = vmatprep.subr.mxu0 %v310
        %442 = vmatpush1.msra.mxu0 %v309
        %443 = vmatprep.subr.mxu0 %v314
        %444 = vmatpush1.msra.mxu0 %v313
        %445 = vmatprep.subr.mxu0 %v318
        %446 = vmatpush1.msra.mxu0 %v317
        %447 = vmatprep.subr.mxu0 %v322
        %448 = vmatpush1.msra.mxu0 %v321
        %449 = vmatprep.subr.mxu0 %v326
        %450 = vmatpush1.msra.mxu0 %v325
        %451 = vmatprep.subr.mxu0 %v330
        %452 = vmatpush1.msra.mxu0 %v329
        %453 = vmatprep.subr.mxu0 %v334
        %454 = vmatpush1.msra.mxu0 %v333
        %455 = vmatprep.subr.mxu0 %v338
        %456 = vmatpush1.msra.mxu0 %v337
        %457 = vmatprep.subr.mxu0 %v342
        %458 = vmatpush1.msra.mxu0 %v341
        %459 = vmatprep.subr.mxu0 %v346
        %460 = vmatpush1.msra.mxu0 %v345
        %461 = vmatprep.subr.mxu0 %v350
        %462 = vmatpush1.msra.mxu0 %v349
        %463 = vmatprep.subr.mxu0 %v354
        %464 = vmatpush1.msra.mxu0 %v353
        %465 = vmatprep.subr.mxu0 %v358
        %466 = vmatpush1.msra.mxu0 %v357
        %467 = vmatprep.subr.mxu0 %v362
        %468 = vmatpush1.msra.mxu0 %v361
        %469 = vmatprep.subr.mxu0 %v366
        %470 = vmatpush1.msra.mxu0 %v365
        %471 = vmatprep.subr.mxu0 %v370
        %472 = vmatpush1.msra.mxu0 %v369
        %473 = vmatprep.subr.mxu0 %v374
        %474 = vmatpush1.msra.mxu0 %v373
        %475 = vmatprep.subr.mxu0 %v378
        %476 = vmatpush1.msra.mxu0 %v377
        %477 = vmatprep.subr.mxu0 %v382
        %478 = vmatpush1.msra.mxu0 %v381
        %479 = vmatprep.subr.mxu0 %v386
        %480 = vmatpush1.msra.mxu0 %v385
        %481 = vmatprep.subr.mxu0 %v390
        %482 = vmatpush1.msra.mxu0 %v389
        %483 = vmatprep.subr.mxu0 %v394
        %484 = vmatpush1.msra.mxu0 %v393
        %485 = vmatprep.subr.mxu0 %v398
        %486 = vmatpush1.msra.mxu0 %v397
        %487 = vmatprep.mubr.f32.mxu0 %v272
        %488 = vmatmul.mubr.f32.gmra.mrb[0].mxu0 %v269
        %v489 = vpop.f32.mrb[0].mxu0
        %v490 = vadd.f32 %v406, %v489
        %v491 = vpop.f32.mrb[0].mxu0
        %v492 = vadd.f32 %v410, %v491
        %493 = vdwg.mxu0
        %494 = vmatprep.subr.mxu0 %v276
        %495 = vmatpush1.msra.mxu0 %v275
        %496 = vmatprep.subr.mxu0 %v280
        %497 = vmatpush1.msra.mxu0 %v279
        %498 = vmatprep.subr.mxu0 %v284
        %499 = vmatpush1.msra.mxu0 %v283
        %500 = vmatprep.subr.mxu0 %v288
        %501 = vmatpush1.msra.mxu0 %v287
        %502 = vmatprep.subr.mxu0 %v292
        %503 = vmatpush1.msra.mxu0 %v291
        %504 = vmatprep.subr.mxu0 %v296
        %505 = vmatpush1.msra.mxu0 %v295
        %506 = vmatprep.subr.mxu0 %v300
        %507 = vmatpush1.msra.mxu0 %v299
        %508 = vmatprep.subr.mxu0 %v304
        %509 = vmatpush1.msra.mxu0 %v303
        %510 = vmatprep.subr.mxu0 %v308
        %511 = vmatpush1.msra.mxu0 %v307
        %512 = vmatprep.subr.mxu0 %v312
        %513 = vmatpush1.msra.mxu0 %v311
        %514 = vmatprep.subr.mxu0 %v316
        %515 = vmatpush1.msra.mxu0 %v315
        %516 = vmatprep.subr.mxu0 %v320
        %517 = vmatpush1.msra.mxu0 %v319
        %518 = vmatprep.subr.mxu0 %v324
        %519 = vmatpush1.msra.mxu0 %v323
        %520 = vmatprep.subr.mxu0 %v328
        %521 = vmatpush1.msra.mxu0 %v327
        %522 = vmatprep.subr.mxu0 %v332
        %523 = vmatpush1.msra.mxu0 %v331
        %524 = vmatprep.subr.mxu0 %v336
        %525 = vmatpush1.msra.mxu0 %v335
        %526 = vmatprep.subr.mxu0 %v340
        %527 = vmatpush1.msra.mxu0 %v339
        %528 = vmatprep.subr.mxu0 %v344
        %529 = vmatpush1.msra.mxu0 %v343
        %530 = vmatprep.subr.mxu0 %v348
        %531 = vmatpush1.msra.mxu0 %v347
        %532 = vmatprep.subr.mxu0 %v352
        %533 = vmatpush1.msra.mxu0 %v351
        %534 = vmatprep.subr.mxu0 %v356
        %535 = vmatpush1.msra.mxu0 %v355
        %536 = vmatprep.subr.mxu0 %v360
        %537 = vmatpush1.msra.mxu0 %v359
        %538 = vmatprep.subr.mxu0 %v364
        %539 = vmatpush1.msra.mxu0 %v363
        %540 = vmatprep.subr.mxu0 %v368
        %541 = vmatpush1.msra.mxu0 %v367
        %542 = vmatprep.subr.mxu0 %v372
        %543 = vmatpush1.msra.mxu0 %v371
        %544 = vmatprep.subr.mxu0 %v376
        %545 = vmatpush1.msra.mxu0 %v375
        %546 = vmatprep.subr.mxu0 %v380
        %547 = vmatpush1.msra.mxu0 %v379
        %548 = vmatprep.subr.mxu0 %v384
        %549 = vmatpush1.msra.mxu0 %v383
        %550 = vmatprep.subr.mxu0 %v388
        %551 = vmatpush1.msra.mxu0 %v387
        %552 = vmatprep.subr.mxu0 %v392
        %553 = vmatpush1.msra.mxu0 %v391
        %554 = vmatprep.subr.mxu0 %v396
        %555 = vmatpush1.msra.mxu0 %v395
        %556 = vmatprep.subr.mxu0 %v400
        %557 = vmatpush1.msra.mxu0 %v399
        %558 = vmatprep.mubr.f32.mxu0 %v272
        %559 = vmatmul.mubr.f32.gmra.mrb[0].mxu0 %v269
        %v560 = vpop.f32.mrb[0].mxu0
        %v561 = vadd.f32 %v414, %v560
        %v562 = vpop.f32.mrb[0].mxu0
        %v563 = vadd.f32 %v418, %v562
        %564 = vdwg.mxu0
        %v565 = vxor.u32 %v490, 2147483648
        %v566 = vmul.f32 %v565, 1.442695
        %v567 = vpow.pop %v566
        %v568 = vadd.f32 %v567, 1.0
        %v569 = vrcp.pop %v568
        %v570 = vmul.f32 1.0, %v569
        %v571 = vxor.u32 %v492, 2147483648
        %v572 = vmul.f32 %v571, 1.442695
        %v573 = vpow.pop %v572
        %v574 = vadd.f32 %v573, 1.0
        %v575 = vrcp.pop %v574
        %v576 = vmul.f32 1.0, %v575
        %v577 = vmul.f32 %v570, %v563
        %v578 = vadd.f32 %v561, %v577
        %v579 = vtanh.pop %v578
        %v580 = vsub.f32 1.0, %v576
        %v581 = vmul.f32 %v580, %v579
        %v582 = vmul.f32 %v576, %v272
        %v583 = vadd.f32 %v581, %v582
        %584 = vst [vmem:[%s4] sm:$0x1] %v583
        // Predicated region
        $region45: #{_forward_impl.2} parent=31 // pred_check
          %p585 = pneg %p99
        $region46: #{_forward_impl.2} parent=31 // pred_check_branch
          %587 = sbr.rel (%p585) target = $region48
        $region47: #{_forward_impl.2} parent=31 // pred_region
          _
        $region48: #{_forward_impl.2} parent=31 // pred_fallthru
          _
        // Predicated region
        $region49: #{_forward_impl.2} parent=31 // pred_check
          %p588 = pneg %p99
        $region50: #{_forward_impl.2} parent=31 // pred_check_branch
          %590 = sbr.rel (%p588) target = $region52
        $region51: #{_forward_impl.2} parent=31 // pred_region
          _
        $region52: #{_forward_impl.2} parent=31 // pred_fallthru
          _
      $region32: #{_forward_impl.2} parent=5 // pred_fallthru
        _
      %p591 = scmp.le.s32.totalorder 2, %s18
      // Predicated region
      $region53: #{_forward_impl.2} parent=5 // pred_check
        %p592 = pneg %p591
      $region54: #{_forward_impl.2} parent=5 // pred_check_branch
        %594 = sbr.rel (%p592) target = $region56
      $region55: #{_forward_impl.2} parent=5 // pred_region
        %s595 = ssub.s32 %s18, 2
      $region56: #{_forward_impl.2} parent=5 // pred_fallthru
        _
    $region6: #{_forward_impl.2} parent=1 // loop_footer
      %s22 = sadd.s32 1, %s18
    $region7: #{_forward_impl.2} parent=1 // loop_footer_branch
      %17 = sbr.rel target = $region3
    $region8: #{_forward_impl.2} parent=1 // loop_exit
      _
    %596 = vsyncpa [#allocation5], 1
    %s597 = scalar_lea.sflag [#allocation5], 1
    %598 = vsyncpa %s597, 1
    %599 = vsyncpa [#allocation7], 1

</llo_original>
